<compile_context>
chip_gen: v5e
topology: v5e:2x2
jax: 0.10.0
libtpu: 0.0.40
codegen_flags: <defaults>
</compile_context>

<pallas_src>
import math

import jax
import jax.numpy as jnp
from jax import lax
from jax.experimental import pallas as pl
from jax.experimental.pallas import tpu as pltpu

# ---------------- configuration (small, consistent with the module) --------
B = 2          # batch
S = 8          # sequence length
D = 32         # d_model
H = 4          # num_heads
DK = D // H    # head dim
DFF = 64       # d_ff
EPS = 1e-5     # nn.LayerNorm default eps
BH = B * H
BS = B * S
W_ROWS = D + 8           # weight rows + bias row + pad (sublane multiple)
FFN_ROWS = D + DFF + 7   # w1 rows + w2 rows + 7 packed vector rows


def _layernorm(x, gamma, beta):
    mu = jnp.mean(x, axis=-1, keepdims=True)
    var = jnp.mean((x - mu) ** 2, axis=-1, keepdims=True)
    return (x - mu) * lax.rsqrt(var + EPS) * gamma + beta


def _bdot(a, b, ca, cb):
    """Batched matmul over the leading dim, contracting a[ca] with b[cb]."""
    return lax.dot_general(a, b, (((ca,), (cb,)), ((0,), (0,))),
                           preferred_element_type=jnp.float32)


def dynrt_kernel(x_ref, w_ref, ffn_ref, o_ref):
    x = x_ref[...]                                          # (B*S, D)

    # ---- fused head-batched QKV projection (one dot, one bias add) -------
    w_qkv = w_ref[0:3 * H, 0:D, :]                          # (3H, D, DK)
    b_qkv = w_ref[0:3 * H, D:D + 1, :]                      # (3H, 1, DK)
    woT = w_ref[3 * H:4 * H, 0:D, :]                        # (H, D, DK)

    # Leading-dim broadcasts only; minor dims untouched (no relayouts).
    x_rep = jnp.broadcast_to(x.reshape(1, B, 1, S, D),
                             (3, B, H, S, D)).reshape(3 * BH, S, D)
    w_rep = jnp.broadcast_to(w_qkv.reshape(3, 1, H, D, DK),
                             (3, B, H, D, DK)).reshape(3 * BH, D, DK)
    b_rep = jnp.broadcast_to(b_qkv.reshape(3, 1, H, 1, DK),
                             (3, B, H, 1, DK)).reshape(3 * BH, 1, DK)

    qkv = _bdot(x_rep, w_rep, 2, 1) + b_rep                 # (3BH, S, DK)
    q = qkv[0:BH]                                           # pre-scaled by 1/sqrt(DK)
    k = qkv[BH:2 * BH]
    v = qkv[2 * BH:3 * BH]

    # ---- scaled dot-product attention, all (batch, head) pairs at once ----
    scores = _bdot(q, k, 2, 2)                              # (BH, S, S)
    # TODO(synk): attention mask path (mask is None in this synthetic setup).
    scores = scores - jnp.max(scores, axis=-1, keepdims=True)
    p = jnp.exp(scores)
    inv_den = pl.reciprocal(jnp.sum(p, axis=-1, keepdims=True), approx=True)
    attn = p * inv_den
    ctx = _bdot(attn, v, 2, 1)                              # (BH, S, DK)

    # ---- output projection; head-concat folded into per-head Wo slices ----
    woT_rep = jnp.broadcast_to(woT[None], (B, H, D, DK)).reshape(BH, D, DK)
    proj = _bdot(ctx, woT_rep, 2, 2)                        # (BH, S, D)
    attn_out = jnp.sum(proj.reshape(B, H, S, D), axis=1).reshape(BS, D)

    # ---- FFN / LayerNorm slab ---------------------------------------------
    w1 = ffn_ref[0:D, :]                                    # (D, DFF)
    w2 = ffn_ref[D:D + DFF, 0:D]                            # (DFF, D)
    vec = ffn_ref[D + DFF:FFN_ROWS, :]                      # (7, DFF)
    bo, g1, be1 = vec[0:1, :D], vec[1:2, :D], vec[2:3, :D]
    b2, g2, be2 = vec[3:4, :D], vec[4:5, :D], vec[5:6, :D]
    b1 = vec[6:7, :]                                        # (1, DFF)

    attn_out = attn_out + bo

    # ---- AddNorm 1:  norm(x + attn_out) ----
    h1 = _layernorm(x + attn_out, g1, be1)                  # (BS, D)

    # ---- FFN:  linear2(relu(linear1(h1))) (dropout = identity) ----
    ff = jnp.maximum(
        jnp.dot(h1, w1, preferred_element_type=jnp.float32) + b1, 0.0)
    ff = jnp.dot(ff, w2, preferred_element_type=jnp.float32) + b2

    # ---- AddNorm 2:  norm(h1 + ff) ----
    o_ref[...] = _layernorm(h1 + ff, g2, be2).astype(o_ref.dtype)


def dynrt_layer(x, params):
    """x: (B, S, D) float32.  params: dict of pre-transposed (in, out) weights."""
    Bx, Sx, Dx = x.shape
    assert (Bx, Sx, Dx) == (B, S, D)
    scale = 1.0 / math.sqrt(DK)

    # ---- pack the 16 parameter tensors into 2 slabs (3 input DMA windows) --
    def heads_in(w):                     # (D, D) -> (H, D, DK): head-major out blocks
        return w.reshape(D, H, DK).transpose(1, 0, 2)

    wo_t = params["wo"].reshape(H, DK, D).transpose(0, 2, 1)        # (H, D, DK)
    w_all = jnp.concatenate(
        [heads_in(params["wq"]) * scale,                            # fold 1/sqrt(dk)
         heads_in(params["wk"]),
         heads_in(params["wv"]),
         wo_t], axis=0)                                             # (4H, D, DK)
    b_band = jnp.concatenate(
        [params["bq"].reshape(H, 1, DK) * scale,
         params["bk"].reshape(H, 1, DK),
         params["bv"].reshape(H, 1, DK),
         jnp.zeros((H, 1, DK), jnp.float32)], axis=0)               # (4H, 1, DK)
    pad = jnp.zeros((4 * H, W_ROWS - D - 1, DK), jnp.float32)
    w_slab = jnp.concatenate([w_all, b_band, pad], axis=1)          # (4H, D+8, DK)

    def pad_row(v):                      # (1, D) -> (1, DFF)
        return jnp.pad(v, ((0, 0), (0, DFF - D)))

    vec = jnp.concatenate(
        [pad_row(params["bo"]), pad_row(params["g1"]), pad_row(params["be1"]),
         pad_row(params["b2"]), pad_row(params["g2"]), pad_row(params["be2"]),
         params["b1"]], axis=0)                                     # (7, DFF)
    w2_pad = jnp.pad(params["w2"], ((0, 0), (0, DFF - D)))          # (DFF, DFF)
    ffn_slab = jnp.concatenate([params["w1"], w2_pad, vec], axis=0)  # (103, DFF)

    x_flat = x.reshape(BS, D)

    vmem_specs = [pl.BlockSpec(memory_space=pltpu.MemorySpace.VMEM)
                  for _ in range(3)]

    out_flat = pl.pallas_call(
        dynrt_kernel,
        out_shape=jax.ShapeDtypeStruct((BS, D), jnp.float32),
        in_specs=vmem_specs,
        out_specs=pl.BlockSpec(memory_space=pltpu.MemorySpace.VMEM),
    )(x_flat, w_slab, ffn_slab)

    return out_flat.reshape(B, S, D)


# ---------------- pure-JAX reference (for sanity check) --------------------
def dynrt_reference(x, p):
    q = x @ p["wq"] + p["bq"]
    k = x @ p["wk"] + p["bk"]
    v = x @ p["wv"] + p["bv"]
    Bx, Sx, Dx = x.shape
    qh = q.reshape(Bx, Sx, H, DK).transpose(0, 2, 1, 3)
    kh = k.reshape(Bx, Sx, H, DK).transpose(0, 2, 1, 3)
    vh = v.reshape(Bx, Sx, H, DK).transpose(0, 2, 1, 3)
    scores = jnp.einsum("bhqd,bhkd->bhqk", qh, kh) / math.sqrt(DK)
    attn = jax.nn.softmax(scores, axis=-1)
    ctx = jnp.einsum("bhqk,bhkd->bhqd", attn, vh)
    ctx = ctx.transpose(0, 2, 1, 3).reshape(Bx, Sx, Dx)
    attn_out = ctx @ p["wo"] + p["bo"]

    def ln(z, g, b):
        mu = jnp.mean(z, axis=-1, keepdims=True)
        var = jnp.mean((z - mu) ** 2, axis=-1, keepdims=True)
        return (z - mu) / jnp.sqrt(var + EPS) * g + b

    h1 = ln(x + attn_out, p["g1"], p["be1"])
    ff = jnp.maximum(h1 @ p["w1"] + p["b1"], 0.0) @ p["w2"] + p["b2"]
    return ln(h1 + ff, p["g2"], p["be2"])


# ---------------- deterministic parameter init ------------------------------
def init_params(key):
    keys = jax.random.split(key, 12)

    def lin(kw, fan_in, fan_out):
        bound = 1.0 / math.sqrt(fan_in)
        w = jax.random.uniform(kw, (fan_in, fan_out), jnp.float32, -bound, bound)
        b = jax.random.uniform(jax.random.fold_in(kw, 1), (1, fan_out),
                               jnp.float32, -bound, bound)
        return w, b

    wq, bq = lin(keys[0], D, D)
    wk, bk = lin(keys[1], D, D)
    wv, bv = lin(keys[2], D, D)
    wo, bo = lin(keys[3], D, D)
    w1, b1 = lin(keys[4], D, DFF)
    w2, b2 = lin(keys[5], DFF, D)
    return {
        "wq": wq, "bq": bq, "wk": wk, "bk": bk, "wv": wv, "bv": bv,
        "wo": wo, "bo": bo,
        "g1": jnp.ones((1, D), jnp.float32), "be1": jnp.zeros((1, D), jnp.float32),
        "w1": w1, "b1": b1, "w2": w2, "b2": b2,
        "g2": jnp.ones((1, D), jnp.float32), "be2": jnp.zeros((1, D), jnp.float32),
    }


if __name__ == "__main__":
    key = jax.random.PRNGKey(0)
    kx, kp = jax.random.split(key)
    x = jax.random.normal(kx, (B, S, D), jnp.float32)
    params = init_params(kp)

    out = dynrt_layer(x, params)
    out = jax.block_until_ready(out)

    ref = dynrt_reference(x, params)
    assert out.shape == (B, S, D)
    # Tolerance accounts for the approximate (EUP) reciprocal in the softmax.
    assert jnp.allclose(out, ref, atol=2e-3, rtol=1e-3), (
        float(jnp.max(jnp.abs(out - ref))))

    print("KERNEL_OK")
</pallas_src>

<mosaic_0001>
module attributes {stable_mosaic.version = 11 : i64} {
  func.func @dynrt_kernel(%arg0: memref<16x32xf32, #tpu.memory_space<vmem>>, %arg1: memref<16x40x8xf32, #tpu.memory_space<vmem>>, %arg2: memref<103x64xf32, #tpu.memory_space<vmem>>, %arg3: memref<16x32xf32, #tpu.memory_space<vmem>>) attributes {dimension_semantics = [], scalar_prefetch = 0 : i64, scratch_operands = 0 : i64, tpu.core_type = #tpu.core_type<tc>} {
    %c0 = arith.constant 0 : index
    %c0_0 = arith.constant 0 : index
    %0 = vector.load %arg0[%c0, %c0_0] : memref<16x32xf32, #tpu.memory_space<vmem>>, vector<16x32xf32>
    %c0_1 = arith.constant 0 : index
    %c0_2 = arith.constant 0 : index
    %c0_3 = arith.constant 0 : index
    %1 = vector.load %arg1[%c0_1, %c0_2, %c0_3] : memref<16x40x8xf32, #tpu.memory_space<vmem>>, vector<12x32x8xf32>
    %c0_4 = arith.constant 0 : index
    %c32 = arith.constant 32 : index
    %c0_5 = arith.constant 0 : index
    %2 = vector.load %arg1[%c0_4, %c32, %c0_5] : memref<16x40x8xf32, #tpu.memory_space<vmem>>, vector<12x1x8xf32>
    %c12 = arith.constant 12 : index
    %c0_6 = arith.constant 0 : index
    %c0_7 = arith.constant 0 : index
    %3 = vector.load %arg1[%c12, %c0_6, %c0_7] : memref<16x40x8xf32, #tpu.memory_space<vmem>>, vector<4x32x8xf32>
    %4 = vector.shape_cast %0 : vector<16x32xf32> to vector<1x2x1x8x32xf32>
    %5 = vector.shape_cast %4 : vector<1x2x1x8x32xf32> to vector<1x2x1x8x32xf32>
    %6 = vector.broadcast %5 : vector<1x2x1x8x32xf32> to vector<3x2x4x8x32xf32>
    %7 = vector.shape_cast %6 : vector<3x2x4x8x32xf32> to vector<24x8x32xf32>
    %8 = vector.shape_cast %1 : vector<12x32x8xf32> to vector<3x1x4x32x8xf32>
    %9 = vector.shape_cast %8 : vector<3x1x4x32x8xf32> to vector<3x1x4x32x8xf32>
    %10 = vector.broadcast %9 : vector<3x1x4x32x8xf32> to vector<3x2x4x32x8xf32>
    %11 = vector.shape_cast %10 : vector<3x2x4x32x8xf32> to vector<24x32x8xf32>
    %12 = vector.shape_cast %2 : vector<12x1x8xf32> to vector<3x1x4x1x8xf32>
    %13 = vector.shape_cast %12 : vector<3x1x4x1x8xf32> to vector<3x1x4x1x8xf32>
    %14 = vector.broadcast %13 : vector<3x1x4x1x8xf32> to vector<3x2x4x1x8xf32>
    %15 = vector.shape_cast %14 : vector<3x2x4x1x8xf32> to vector<24x1x8xf32>
    %cst = arith.constant dense<0.000000e+00> : vector<24x8x8xf32>
    %16 = tpu.matmul %7, %11, %cst {dimension_numbers = #tpu.dot_dimension_numbers<[2], [1], [1], [2], [0, 0, 0, 1, 1, 2], [0], [0]>} : vector<24x8x32xf32>, vector<24x32x8xf32>, vector<24x8x8xf32> -> vector<24x8x8xf32>
    %17 = vector.broadcast %15 : vector<24x1x8xf32> to vector<24x8x8xf32>
    %18 = arith.addf %16, %17 : vector<24x8x8xf32>
    %19 = vector.extract_strided_slice %18 {offsets = [0, 0, 0], sizes = [8, 8, 8], strides = [1, 1, 1]} : vector<24x8x8xf32> to vector<8x8x8xf32>
    %20 = vector.extract_strided_slice %18 {offsets = [8, 0, 0], sizes = [8, 8, 8], strides = [1, 1, 1]} : vector<24x8x8xf32> to vector<8x8x8xf32>
    %21 = vector.extract_strided_slice %18 {offsets = [16, 0, 0], sizes = [8, 8, 8], strides = [1, 1, 1]} : vector<24x8x8xf32> to vector<8x8x8xf32>
    %cst_8 = arith.constant dense<0.000000e+00> : vector<8x8x8xf32>
    %22 = tpu.matmul %19, %20, %cst_8 {dimension_numbers = #tpu.dot_dimension_numbers<[2], [2], [1], [1], [0, 0, 0, 1, 1, 1], [0], [0]>} : vector<8x8x8xf32>, vector<8x8x8xf32>, vector<8x8x8xf32> -> vector<8x8x8xf32>
    %cst_9 = arith.constant dense<0xFF800000> : vector<8x8xf32>
    %23 = vector.multi_reduction <maximumf>, %22, %cst_9 [2] : vector<8x8x8xf32> to vector<8x8xf32>
    %24 = vector.shape_cast %23 : vector<8x8xf32> to vector<8x8x1xf32>
    %25 = vector.broadcast %24 : vector<8x8x1xf32> to vector<8x8x8xf32>
    %26 = arith.subf %22, %25 : vector<8x8x8xf32>
    %27 = math.exp %26 : vector<8x8x8xf32>
    %cst_10 = arith.constant dense<0.000000e+00> : vector<8x8xf32>
    %28 = vector.multi_reduction <add>, %27, %cst_10 [2] : vector<8x8x8xf32> to vector<8x8xf32>
    %29 = vector.shape_cast %28 : vector<8x8xf32> to vector<8x8x1xf32>
    %30 = tpu.reciprocal %29 {approx = true} : vector<8x8x1xf32> -> vector<8x8x1xf32>
    %31 = vector.broadcast %30 : vector<8x8x1xf32> to vector<8x8x8xf32>
    %32 = arith.mulf %27, %31 : vector<8x8x8xf32>
    %cst_11 = arith.constant dense<0.000000e+00> : vector<8x8x8xf32>
    %33 = tpu.matmul %32, %21, %cst_11 {dimension_numbers = #tpu.dot_dimension_numbers<[2], [1], [1], [2], [0, 0, 0, 1, 1, 2], [0], [0]>} : vector<8x8x8xf32>, vector<8x8x8xf32>, vector<8x8x8xf32> -> vector<8x8x8xf32>
    %34 = vector.shape_cast %3 : vector<4x32x8xf32> to vector<1x4x32x8xf32>
    %35 = vector.shape_cast %34 : vector<1x4x32x8xf32> to vector<1x4x32x8xf32>
    %36 = vector.broadcast %35 : vector<1x4x32x8xf32> to vector<2x4x32x8xf32>
    %37 = vector.shape_cast %36 : vector<2x4x32x8xf32> to vector<8x32x8xf32>
    %cst_12 = arith.constant dense<0.000000e+00> : vector<8x8x32xf32>
    %38 = tpu.matmul %33, %37, %cst_12 {dimension_numbers = #tpu.dot_dimension_numbers<[2], [2], [1], [1], [0, 0, 0, 1, 1, 1], [0], [0]>} : vector<8x8x8xf32>, vector<8x32x8xf32>, vector<8x8x32xf32> -> vector<8x8x32xf32>
    %39 = vector.shape_cast %38 : vector<8x8x32xf32> to vector<2x4x8x32xf32>
    %cst_13 = arith.constant dense<0.000000e+00> : vector<2x8x32xf32>
    %40 = vector.multi_reduction <add>, %39, %cst_13 [1] : vector<2x4x8x32xf32> to vector<2x8x32xf32>
    %41 = vector.shape_cast %40 : vector<2x8x32xf32> to vector<16x32xf32>
    %c0_14 = arith.constant 0 : index
    %c0_15 = arith.constant 0 : index
    %42 = vector.load %arg2[%c0_14, %c0_15] : memref<103x64xf32, #tpu.memory_space<vmem>>, vector<32x64xf32>
    %c32_16 = arith.constant 32 : index
    %c0_17 = arith.constant 0 : index
    %43 = vector.load %arg2[%c32_16, %c0_17] : memref<103x64xf32, #tpu.memory_space<vmem>>, vector<64x32xf32>
    %c96 = arith.constant 96 : index
    %c0_18 = arith.constant 0 : index
    %44 = vector.load %arg2[%c96, %c0_18] : memref<103x64xf32, #tpu.memory_space<vmem>>, vector<7x64xf32>
    %45 = vector.extract_strided_slice %44 {offsets = [0, 0], sizes = [1, 32], strides = [1, 1]} : vector<7x64xf32> to vector<1x32xf32>
    %46 = vector.extract_strided_slice %44 {offsets = [1, 0], sizes = [1, 32], strides = [1, 1]} : vector<7x64xf32> to vector<1x32xf32>
    %47 = vector.extract_strided_slice %44 {offsets = [2, 0], sizes = [1, 32], strides = [1, 1]} : vector<7x64xf32> to vector<1x32xf32>
    %48 = vector.extract_strided_slice %44 {offsets = [3, 0], sizes = [1, 32], strides = [1, 1]} : vector<7x64xf32> to vector<1x32xf32>
    %49 = vector.extract_strided_slice %44 {offsets = [4, 0], sizes = [1, 32], strides = [1, 1]} : vector<7x64xf32> to vector<1x32xf32>
    %50 = vector.extract_strided_slice %44 {offsets = [5, 0], sizes = [1, 32], strides = [1, 1]} : vector<7x64xf32> to vector<1x32xf32>
    %51 = vector.extract_strided_slice %44 {offsets = [6, 0], sizes = [1, 64], strides = [1, 1]} : vector<7x64xf32> to vector<1x64xf32>
    %52 = vector.broadcast %45 : vector<1x32xf32> to vector<16x32xf32>
    %53 = arith.addf %41, %52 : vector<16x32xf32>
    %54 = arith.addf %0, %53 : vector<16x32xf32>
    %cst_19 = arith.constant dense<0.000000e+00> : vector<16xf32>
    %55 = vector.multi_reduction <add>, %54, %cst_19 [1] : vector<16x32xf32> to vector<16xf32>
    %56 = vector.shape_cast %55 : vector<16xf32> to vector<16x1xf32>
    %cst_20 = arith.constant 3.200000e+01 : f32
    %57 = vector.broadcast %cst_20 : f32 to vector<16x1xf32>
    %58 = arith.divf %56, %57 : vector<16x1xf32>
    %59 = vector.broadcast %58 : vector<16x1xf32> to vector<16x32xf32>
    %60 = arith.subf %54, %59 : vector<16x32xf32>
    %61 = arith.mulf %60, %60 : vector<16x32xf32>
    %cst_21 = arith.constant dense<0.000000e+00> : vector<16xf32>
    %62 = vector.multi_reduction <add>, %61, %cst_21 [1] : vector<16x32xf32> to vector<16xf32>
    %63 = vector.shape_cast %62 : vector<16xf32> to vector<16x1xf32>
    %cst_22 = arith.constant 3.200000e+01 : f32
    %64 = vector.broadcast %cst_22 : f32 to vector<16x1xf32>
    %65 = arith.divf %63, %64 : vector<16x1xf32>
    %66 = vector.broadcast %58 : vector<16x1xf32> to vector<16x32xf32>
    %67 = arith.subf %54, %66 : vector<16x32xf32>
    %cst_23 = arith.constant 9.99999974E-6 : f32
    %68 = vector.broadcast %cst_23 : f32 to vector<16x1xf32>
    %69 = arith.addf %65, %68 : vector<16x1xf32>
    %70 = math.rsqrt %69 : vector<16x1xf32>
    %71 = vector.broadcast %70 : vector<16x1xf32> to vector<16x32xf32>
    %72 = arith.mulf %67, %71 : vector<16x32xf32>
    %73 = vector.broadcast %46 : vector<1x32xf32> to vector<16x32xf32>
    %74 = arith.mulf %72, %73 : vector<16x32xf32>
    %75 = vector.broadcast %47 : vector<1x32xf32> to vector<16x32xf32>
    %76 = arith.addf %74, %75 : vector<16x32xf32>
    %cst_24 = arith.constant dense<0.000000e+00> : vector<16x64xf32>
    %77 = tpu.matmul %76, %42, %cst_24 {dimension_numbers = #tpu.dot_dimension_numbers<[1], [0], [0], [1], [0, 0, 1, 1], [], []>} : vector<16x32xf32>, vector<32x64xf32>, vector<16x64xf32> -> vector<16x64xf32>
    %78 = vector.broadcast %51 : vector<1x64xf32> to vector<16x64xf32>
    %79 = arith.addf %77, %78 : vector<16x64xf32>
    %cst_25 = arith.constant 0.000000e+00 : f32
    %80 = vector.broadcast %cst_25 : f32 to vector<16x64xf32>
    %81 = arith.maximumf %79, %80 : vector<16x64xf32>
    %cst_26 = arith.constant dense<0.000000e+00> : vector<16x32xf32>
    %82 = tpu.matmul %81, %43, %cst_26 {dimension_numbers = #tpu.dot_dimension_numbers<[1], [0], [0], [1], [0, 0, 1, 1], [], []>} : vector<16x64xf32>, vector<64x32xf32>, vector<16x32xf32> -> vector<16x32xf32>
    %83 = vector.broadcast %48 : vector<1x32xf32> to vector<16x32xf32>
    %84 = arith.addf %82, %83 : vector<16x32xf32>
    %85 = arith.addf %76, %84 : vector<16x32xf32>
    %cst_27 = arith.constant dense<0.000000e+00> : vector<16xf32>
    %86 = vector.multi_reduction <add>, %85, %cst_27 [1] : vector<16x32xf32> to vector<16xf32>
    %87 = vector.shape_cast %86 : vector<16xf32> to vector<16x1xf32>
    %cst_28 = arith.constant 3.200000e+01 : f32
    %88 = vector.broadcast %cst_28 : f32 to vector<16x1xf32>
    %89 = arith.divf %87, %88 : vector<16x1xf32>
    %90 = vector.broadcast %89 : vector<16x1xf32> to vector<16x32xf32>
    %91 = arith.subf %85, %90 : vector<16x32xf32>
    %92 = arith.mulf %91, %91 : vector<16x32xf32>
    %cst_29 = arith.constant dense<0.000000e+00> : vector<16xf32>
    %93 = vector.multi_reduction <add>, %92, %cst_29 [1] : vector<16x32xf32> to vector<16xf32>
    %94 = vector.shape_cast %93 : vector<16xf32> to vector<16x1xf32>
    %cst_30 = arith.constant 3.200000e+01 : f32
    %95 = vector.broadcast %cst_30 : f32 to vector<16x1xf32>
    %96 = arith.divf %94, %95 : vector<16x1xf32>
    %97 = vector.broadcast %89 : vector<16x1xf32> to vector<16x32xf32>
    %98 = arith.subf %85, %97 : vector<16x32xf32>
    %cst_31 = arith.constant 9.99999974E-6 : f32
    %99 = vector.broadcast %cst_31 : f32 to vector<16x1xf32>
    %100 = arith.addf %96, %99 : vector<16x1xf32>
    %101 = math.rsqrt %100 : vector<16x1xf32>
    %102 = vector.broadcast %101 : vector<16x1xf32> to vector<16x32xf32>
    %103 = arith.mulf %98, %102 : vector<16x32xf32>
    %104 = vector.broadcast %49 : vector<1x32xf32> to vector<16x32xf32>
    %105 = arith.mulf %103, %104 : vector<16x32xf32>
    %106 = vector.broadcast %50 : vector<1x32xf32> to vector<16x32xf32>
    %107 = arith.addf %105, %106 : vector<16x32xf32>
    %c0_32 = arith.constant 0 : index
    %c0_33 = arith.constant 0 : index
    %108 = vector.load %arg3[%c0_32, %c0_33] : memref<16x32xf32, #tpu.memory_space<vmem>>, vector<16x32xf32>
    tpu.vector_store %arg3[%c0_32, %c0_33], %107 {strides = array<i32>} : memref<16x32xf32, #tpu.memory_space<vmem>>, vector<16x32xf32>,
    return
  }
}

</mosaic_0001>

<llo_original>
// kernel: tpu_custom_call.1
$region0: #{tpu_custom_call.1}
  #allocation0 [shape = 'u32[]', space=smem, size = 0x4, offset = 0x4, fixed_abs, tag = 'smem constant byte address 0x4 - core index']
  #allocation1 [shape = 'u32[72,128]{1,0:T(1,128)}', space=vmem, size = 0x9000, scoped, tag = 'internal scratch']
  %s0 = inlined_call_operand.vmem [shape: f32[16,32], index: 0, kind: input, shape index: {}]
  %s1 = inlined_call_operand.vmem [shape: f32[16,40,8], index: 1, kind: input, shape index: {}]
  %s2 = inlined_call_operand.vmem [shape: f32[103,64], index: 2, kind: input, shape index: {}]
  %s3 = inlined_call_operand.hbm [shape: f32[16,32], index: 3, kind: output, shape index: {}]
  %s4 = sld [smem:[#allocation0]]
  $region22: #{tpu_custom_call.1} parent=0
    _
  %s6 = ssub.s32 1, %s4
  %s7 = scalar_select 0, %s6, %s4
  $region1: #{tpu_custom_call.1} parent=0
    #allocation2 [shape = 'u8[8192]{0}', space=vmem, size = 0x2000, scoped, tag = 'output window, operand 0, single buffered']
    #allocation3 [shape = 's32[1]{0}', space=sflag, size = 0x4, scoped, tag = 'scoped memory for tpu_custom_call.1']
    %8 = vsyncpa [#allocation3], 0
    // Predicated region
    $region2: #{tpu_custom_call.1} parent=1 // pred_check
      _
    $region3: #{tpu_custom_call.1} parent=1 // pred_check_branch
      %10 = sbr.rel (0) target = $region5
    $region4: #{tpu_custom_call.1} parent=1 // pred_region
      _
    $region5: #{tpu_custom_call.1} parent=1 // pred_fallthru
      _
    // Predicated region
    $region6: #{tpu_custom_call.1} parent=1 // pred_check
      _
    $region7: #{tpu_custom_call.1} parent=1 // pred_check_branch
      %12 = sbr.rel (0) target = $region9
    $region8: #{tpu_custom_call.1} parent=1 // pred_region
      _
    $region9: #{tpu_custom_call.1} parent=1 // pred_fallthru
      _
    // Predicated region
    $region10: #{tpu_custom_call.1} parent=1 // pred_check
      _
    $region11: #{tpu_custom_call.1} parent=1 // pred_check_branch
      %14 = sbr.rel (0) target = $region13
    $region12: #{tpu_custom_call.1} parent=1 // pred_region
      _
    $region13: #{tpu_custom_call.1} parent=1 // pred_fallthru
      _
    %v15 = vld [vmem:[%s0] sm:$0xff]
    %v16 = vld [vmem:[%s0 + $0x8] sm:$0xff]
    %v17 = vld [vmem:[%s1] sm:$0xff]
    %v18 = vld [vmem:[%s1 + $0x8] sm:$0xff]
    %v19 = vld [vmem:[%s1 + $0x10] sm:$0xff]
    %v20 = vld [vmem:[%s1 + $0x18] sm:$0xff]
    %v21 = vld [vmem:[%s1 + $0x28] sm:$0xff]
    %v22 = vld [vmem:[%s1 + $0x30] sm:$0xff]
    %v23 = vld [vmem:[%s1 + $0x38] sm:$0xff]
    %v24 = vld [vmem:[%s1 + $0x40] sm:$0xff]
    %v25 = vld [vmem:[%s1 + $0x50] sm:$0xff]
    %v26 = vld [vmem:[%s1 + $0x58] sm:$0xff]
    %v27 = vld [vmem:[%s1 + $0x60] sm:$0xff]
    %v28 = vld [vmem:[%s1 + $0x68] sm:$0xff]
    %v29 = vld [vmem:[%s1 + $0x78] sm:$0xff]
    %v30 = vld [vmem:[%s1 + $0x80] sm:$0xff]
    %v31 = vld [vmem:[%s1 + $0x88] sm:$0xff]
    %v32 = vld [vmem:[%s1 + $0x90] sm:$0xff]
    %v33 = vld [vmem:[%s1 + $0xa0] sm:$0xff]
    %v34 = vld [vmem:[%s1 + $0xa8] sm:$0xff]
    %v35 = vld [vmem:[%s1 + $0xb0] sm:$0xff]
    %v36 = vld [vmem:[%s1 + $0xb8] sm:$0xff]
    %v37 = vld [vmem:[%s1 + $0xc8] sm:$0xff]
    %v38 = vld [vmem:[%s1 + $0xd0] sm:$0xff]
    %v39 = vld [vmem:[%s1 + $0xd8] sm:$0xff]
    %v40 = vld [vmem:[%s1 + $0xe0] sm:$0xff]
    %v41 = vld [vmem:[%s1 + $0xf0] sm:$0xff]
    %v42 = vld [vmem:[%s1 + $0xf8] sm:$0xff]
    %v43 = vld [vmem:[%s1 + $0x100] sm:$0xff]
    %v44 = vld [vmem:[%s1 + $0x108] sm:$0xff]
    %v45 = vld [vmem:[%s1 + $0x118] sm:$0xff]
    %v46 = vld [vmem:[%s1 + $0x120] sm:$0xff]
    %v47 = vld [vmem:[%s1 + $0x128] sm:$0xff]
    %v48 = vld [vmem:[%s1 + $0x130] sm:$0xff]
    %v49 = vld [vmem:[%s1 + $0x140] sm:$0xff]
    %v50 = vld [vmem:[%s1 + $0x148] sm:$0xff]
    %v51 = vld [vmem:[%s1 + $0x150] sm:$0xff]
    %v52 = vld [vmem:[%s1 + $0x158] sm:$0xff]
    %v53 = vld [vmem:[%s1 + $0x168] sm:$0xff]
    %v54 = vld [vmem:[%s1 + $0x170] sm:$0xff]
    %v55 = vld [vmem:[%s1 + $0x178] sm:$0xff]
    %v56 = vld [vmem:[%s1 + $0x180] sm:$0xff]
    %v57 = vld [vmem:[%s1 + $0x190] sm:$0xff]
    %v58 = vld [vmem:[%s1 + $0x198] sm:$0xff]
    %v59 = vld [vmem:[%s1 + $0x1a0] sm:$0xff]
    %v60 = vld [vmem:[%s1 + $0x1a8] sm:$0xff]
    %v61 = vld [vmem:[%s1 + $0x1b8] sm:$0xff]
    %v62 = vld [vmem:[%s1 + $0x1c0] sm:$0xff]
    %v63 = vld [vmem:[%s1 + $0x1c8] sm:$0xff]
    %v64 = vld [vmem:[%s1 + $0x1d0] sm:$0xff]
    %v65 = vld [vmem:[%s1 + $0x20] sm:$0x1]
    %v66 = vld [vmem:[%s1 + $0x48] sm:$0x1]
    %v67 = vld [vmem:[%s1 + $0x70] sm:$0x1]
    %v68 = vld [vmem:[%s1 + $0x98] sm:$0x1]
    %v69 = vld [vmem:[%s1 + $0xc0] sm:$0x1]
    %v70 = vld [vmem:[%s1 + $0xe8] sm:$0x1]
    %v71 = vld [vmem:[%s1 + $0x110] sm:$0x1]
    %v72 = vld [vmem:[%s1 + $0x138] sm:$0x1]
    %v73 = vld [vmem:[%s1 + $0x160] sm:$0x1]
    %v74 = vld [vmem:[%s1 + $0x188] sm:$0x1]
    %v75 = vld [vmem:[%s1 + $0x1b0] sm:$0x1]
    %v76 = vld [vmem:[%s1 + $0x1d8] sm:$0x1]
    %s77 = scalar_lea.vmem %s1, 480
    %v78 = vld [vmem:[%s77] sm:$0xff]
    %v79 = vld [vmem:[%s77 + $0x8] sm:$0xff]
    %v80 = vld [vmem:[%s77 + $0x10] sm:$0xff]
    %v81 = vld [vmem:[%s77 + $0x18] sm:$0xff]
    %v82 = vld [vmem:[%s77 + $0x28] sm:$0xff]
    %v83 = vld [vmem:[%s77 + $0x30] sm:$0xff]
    %v84 = vld [vmem:[%s77 + $0x38] sm:$0xff]
    %v85 = vld [vmem:[%s77 + $0x40] sm:$0xff]
    %v86 = vld [vmem:[%s77 + $0x50] sm:$0xff]
    %v87 = vld [vmem:[%s77 + $0x58] sm:$0xff]
    %v88 = vld [vmem:[%s77 + $0x60] sm:$0xff]
    %v89 = vld [vmem:[%s77 + $0x68] sm:$0xff]
    %v90 = vld [vmem:[%s77 + $0x78] sm:$0xff]
    %v91 = vld [vmem:[%s77 + $0x80] sm:$0xff]
    %v92 = vld [vmem:[%s77 + $0x88] sm:$0xff]
    %v93 = vld [vmem:[%s77 + $0x90] sm:$0xff]
    %v94 = vperm.slane %v65, 0
    %v95 = vperm.slane %v66, 0
    %v96 = vperm.slane %v67, 0
    %v97 = vperm.slane %v68, 0
    %v98 = vperm.slane %v69, 0
    %v99 = vperm.slane %v70, 0
    %v100 = vperm.slane %v71, 0
    %v101 = vperm.slane %v72, 0
    %v102 = vperm.slane %v73, 0
    %v103 = vperm.slane %v74, 0
    %v104 = vperm.slane %v75, 0
    %v105 = vperm.slane %v76, 0
    %vm106 = vcmask 261120
    %v108 = vsel %vm106, %v15, 0
    %110 = vmatpush.msra.mxu0 0.0
    %111 = vmatpush.msra.mxu0 0.0
    %112 = vmatpush.msra.mxu0 0.0
    %113 = vmatpush.msra.mxu0 0.0
    %114 = vmatpush.msra.mxu0 0.0
    %115 = vmatpush.msra.mxu0 0.0
    %116 = vmatpush.msra.mxu0 0.0
    %117 = vmatpush.msra.mxu0 0.0
    %118 = vmatpush.msra.mxu0 0.0
    %119 = vmatpush.msra.mxu0 0.0
    %120 = vmatpush.msra.mxu0 0.0
    %121 = vmatpush.msra.mxu0 0.0
    %122 = vmatpush.msra.mxu0 %v20
    %123 = vmatpush.msra.mxu0 %v19
    %124 = vmatpush.msra.mxu0 %v18
    %125 = vmatpush.msra.mxu0 %v17
    %126 = vmatmul.f32.gmra.mxu0 %v108
    %v127 = vpop.f32.mrf.mxu0
    %v128 = vadd.f32 %v94, %v127
    %129 = vdwg.mxu0
    %130 = vmatpush.msra.mxu0 0.0
    %131 = vmatpush.msra.mxu0 0.0
    %132 = vmatpush.msra.mxu0 0.0
    %133 = vmatpush.msra.mxu0 0.0
    %134 = vmatpush.msra.mxu0 0.0
    %135 = vmatpush.msra.mxu0 0.0
    %136 = vmatpush.msra.mxu0 0.0
    %137 = vmatpush.msra.mxu0 0.0
    %138 = vmatpush.msra.mxu0 0.0
    %139 = vmatpush.msra.mxu0 0.0
    %140 = vmatpush.msra.mxu0 0.0
    %141 = vmatpush.msra.mxu0 0.0
    %142 = vmatpush.msra.mxu0 %v24
    %143 = vmatpush.msra.mxu0 %v23
    %144 = vmatpush.msra.mxu0 %v22
    %145 = vmatpush.msra.mxu0 %v21
    %146 = vmatmul.f32.gmra.mxu0 %v108
    %v147 = vpop.f32.mrf.mxu0
    %v148 = vadd.f32 %v95, %v147
    %149 = vdwg.mxu0
    %150 = vmatpush.msra.mxu0 0.0
    %151 = vmatpush.msra.mxu0 0.0
    %152 = vmatpush.msra.mxu0 0.0
    %153 = vmatpush.msra.mxu0 0.0
    %154 = vmatpush.msra.mxu0 0.0
    %155 = vmatpush.msra.mxu0 0.0
    %156 = vmatpush.msra.mxu0 0.0
    %157 = vmatpush.msra.mxu0 0.0
    %158 = vmatpush.msra.mxu0 0.0
    %159 = vmatpush.msra.mxu0 0.0
    %160 = vmatpush.msra.mxu0 0.0
    %161 = vmatpush.msra.mxu0 0.0
    %162 = vmatpush.msra.mxu0 %v28
    %163 = vmatpush.msra.mxu0 %v27
    %164 = vmatpush.msra.mxu0 %v26
    %165 = vmatpush.msra.mxu0 %v25
    %166 = vmatmul.f32.gmra.mxu0 %v108
    %v167 = vpop.f32.mrf.mxu0
    %v168 = vadd.f32 %v96, %v167
    %169 = vdwg.mxu0
    %170 = vmatpush.msra.mxu0 0.0
    %171 = vmatpush.msra.mxu0 0.0
    %172 = vmatpush.msra.mxu0 0.0
    %173 = vmatpush.msra.mxu0 0.0
    %174 = vmatpush.msra.mxu0 0.0
    %175 = vmatpush.msra.mxu0 0.0
    %176 = vmatpush.msra.mxu0 0.0
    %177 = vmatpush.msra.mxu0 0.0
    %178 = vmatpush.msra.mxu0 0.0
    %179 = vmatpush.msra.mxu0 0.0
    %180 = vmatpush.msra.mxu0 0.0
    %181 = vmatpush.msra.mxu0 0.0
    %182 = vmatpush.msra.mxu0 %v32
    %183 = vmatpush.msra.mxu0 %v31
    %184 = vmatpush.msra.mxu0 %v30
    %185 = vmatpush.msra.mxu0 %v29
    %186 = vmatmul.f32.gmra.mxu0 %v108
    %v187 = vpop.f32.mrf.mxu0
    %v188 = vadd.f32 %v97, %v187
    %189 = vdwg.mxu0
    %v191 = vsel %vm106, %v16, 0
    %193 = vmatpush.msra.mxu0 0.0
    %194 = vmatpush.msra.mxu0 0.0
    %195 = vmatpush.msra.mxu0 0.0
    %196 = vmatpush.msra.mxu0 0.0
    %197 = vmatpush.msra.mxu0 0.0
    %198 = vmatpush.msra.mxu0 0.0
    %199 = vmatpush.msra.mxu0 0.0
    %200 = vmatpush.msra.mxu0 0.0
    %201 = vmatpush.msra.mxu0 0.0
    %202 = vmatpush.msra.mxu0 0.0
    %203 = vmatpush.msra.mxu0 0.0
    %204 = vmatpush.msra.mxu0 0.0
    %205 = vmatpush.msra.mxu0 %v20
    %206 = vmatpush.msra.mxu0 %v19
    %207 = vmatpush.msra.mxu0 %v18
    %208 = vmatpush.msra.mxu0 %v17
    %209 = vmatmul.f32.gmra.mxu0 %v191
    %v210 = vpop.f32.mrf.mxu0
    %v211 = vadd.f32 %v94, %v210
    %212 = vdwg.mxu0
    %213 = vmatpush.msra.mxu0 0.0
    %214 = vmatpush.msra.mxu0 0.0
    %215 = vmatpush.msra.mxu0 0.0
    %216 = vmatpush.msra.mxu0 0.0
    %217 = vmatpush.msra.mxu0 0.0
    %218 = vmatpush.msra.mxu0 0.0
    %219 = vmatpush.msra.mxu0 0.0
    %220 = vmatpush.msra.mxu0 0.0
    %221 = vmatpush.msra.mxu0 0.0
    %222 = vmatpush.msra.mxu0 0.0
    %223 = vmatpush.msra.mxu0 0.0
    %224 = vmatpush.msra.mxu0 0.0
    %225 = vmatpush.msra.mxu0 %v24
    %226 = vmatpush.msra.mxu0 %v23
    %227 = vmatpush.msra.mxu0 %v22
    %228 = vmatpush.msra.mxu0 %v21
    %229 = vmatmul.f32.gmra.mxu0 %v191
    %v230 = vpop.f32.mrf.mxu0
    %v231 = vadd.f32 %v95, %v230
    %232 = vdwg.mxu0
    %233 = vmatpush.msra.mxu0 0.0
    %234 = vmatpush.msra.mxu0 0.0
    %235 = vmatpush.msra.mxu0 0.0
    %236 = vmatpush.msra.mxu0 0.0
    %237 = vmatpush.msra.mxu0 0.0
    %238 = vmatpush.msra.mxu0 0.0
    %239 = vmatpush.msra.mxu0 0.0
    %240 = vmatpush.msra.mxu0 0.0
    %241 = vmatpush.msra.mxu0 0.0
    %242 = vmatpush.msra.mxu0 0.0
    %243 = vmatpush.msra.mxu0 0.0
    %244 = vmatpush.msra.mxu0 0.0
    %245 = vmatpush.msra.mxu0 %v28
    %246 = vmatpush.msra.mxu0 %v27
    %247 = vmatpush.msra.mxu0 %v26
    %248 = vmatpush.msra.mxu0 %v25
    %249 = vmatmul.f32.gmra.mxu0 %v191
    %v250 = vpop.f32.mrf.mxu0
    %v251 = vadd.f32 %v96, %v250
    %252 = vdwg.mxu0
    %253 = vmatpush.msra.mxu0 0.0
    %254 = vmatpush.msra.mxu0 0.0
    %255 = vmatpush.msra.mxu0 0.0
    %256 = vmatpush.msra.mxu0 0.0
    %257 = vmatpush.msra.mxu0 0.0
    %258 = vmatpush.msra.mxu0 0.0
    %259 = vmatpush.msra.mxu0 0.0
    %260 = vmatpush.msra.mxu0 0.0
    %261 = vmatpush.msra.mxu0 0.0
    %262 = vmatpush.msra.mxu0 0.0
    %263 = vmatpush.msra.mxu0 0.0
    %264 = vmatpush.msra.mxu0 0.0
    %265 = vmatpush.msra.mxu0 %v32
    %266 = vmatpush.msra.mxu0 %v31
    %267 = vmatpush.msra.mxu0 %v30
    %268 = vmatpush.msra.mxu0 %v29
    %269 = vmatmul.f32.gmra.mxu0 %v191
    %v270 = vpop.f32.mrf.mxu0
    %v271 = vadd.f32 %v97, %v270
    %272 = vdwg.mxu0
    %273 = vmatpush.msra.mxu0 0.0
    %274 = vmatpush.msra.mxu0 0.0
    %275 = vmatpush.msra.mxu0 0.0
    %276 = vmatpush.msra.mxu0 0.0
    %277 = vmatpush.msra.mxu0 0.0
    %278 = vmatpush.msra.mxu0 0.0
    %279 = vmatpush.msra.mxu0 0.0
    %280 = vmatpush.msra.mxu0 0.0
    %281 = vmatpush.msra.mxu0 0.0
    %282 = vmatpush.msra.mxu0 0.0
    %283 = vmatpush.msra.mxu0 0.0
    %284 = vmatpush.msra.mxu0 0.0
    %285 = vmatpush.msra.mxu0 %v36
    %286 = vmatpush.msra.mxu0 %v35
    %287 = vmatpush.msra.mxu0 %v34
    %288 = vmatpush.msra.mxu0 %v33
    %289 = vmatmul.f32.gmra.mxu0 %v108
    %v290 = vpop.f32.mrf.mxu0
    %v291 = vadd.f32 %v98, %v290
    %292 = vdwg.mxu0
    %293 = vmatpush.msra.mxu0 0.0
    %294 = vmatpush.msra.mxu0 0.0
    %295 = vmatpush.msra.mxu0 0.0
    %296 = vmatpush.msra.mxu0 0.0
    %297 = vmatpush.msra.mxu0 0.0
    %298 = vmatpush.msra.mxu0 0.0
    %299 = vmatpush.msra.mxu0 0.0
    %300 = vmatpush.msra.mxu0 0.0
    %301 = vmatpush.msra.mxu0 0.0
    %302 = vmatpush.msra.mxu0 0.0
    %303 = vmatpush.msra.mxu0 0.0
    %304 = vmatpush.msra.mxu0 0.0
    %305 = vmatpush.msra.mxu0 %v40
    %306 = vmatpush.msra.mxu0 %v39
    %307 = vmatpush.msra.mxu0 %v38
    %308 = vmatpush.msra.mxu0 %v37
    %309 = vmatmul.f32.gmra.mxu0 %v108
    %v310 = vpop.f32.mrf.mxu0
    %v311 = vadd.f32 %v99, %v310
    %312 = vdwg.mxu0
    %313 = vmatpush.msra.mxu0 0.0
    %314 = vmatpush.msra.mxu0 0.0
    %315 = vmatpush.msra.mxu0 0.0
    %316 = vmatpush.msra.mxu0 0.0
    %317 = vmatpush.msra.mxu0 0.0
    %318 = vmatpush.msra.mxu0 0.0
    %319 = vmatpush.msra.mxu0 0.0
    %320 = vmatpush.msra.mxu0 0.0
    %321 = vmatpush.msra.mxu0 0.0
    %322 = vmatpush.msra.mxu0 0.0
    %323 = vmatpush.msra.mxu0 0.0
    %324 = vmatpush.msra.mxu0 0.0
    %325 = vmatpush.msra.mxu0 %v44
    %326 = vmatpush.msra.mxu0 %v43
    %327 = vmatpush.msra.mxu0 %v42
    %328 = vmatpush.msra.mxu0 %v41
    %329 = vmatmul.f32.gmra.mxu0 %v108
    %v330 = vpop.f32.mrf.mxu0
    %v331 = vadd.f32 %v100, %v330
    %332 = vdwg.mxu0
    %333 = vmatpush.msra.mxu0 0.0
    %334 = vmatpush.msra.mxu0 0.0
    %335 = vmatpush.msra.mxu0 0.0
    %336 = vmatpush.msra.mxu0 0.0
    %337 = vmatpush.msra.mxu0 0.0
    %338 = vmatpush.msra.mxu0 0.0
    %339 = vmatpush.msra.mxu0 0.0
    %340 = vmatpush.msra.mxu0 0.0
    %341 = vmatpush.msra.mxu0 0.0
    %342 = vmatpush.msra.mxu0 0.0
    %343 = vmatpush.msra.mxu0 0.0
    %344 = vmatpush.msra.mxu0 0.0
    %345 = vmatpush.msra.mxu0 %v48
    %346 = vmatpush.msra.mxu0 %v47
    %347 = vmatpush.msra.mxu0 %v46
    %348 = vmatpush.msra.mxu0 %v45
    %349 = vmatmul.f32.gmra.mxu0 %v108
    %v350 = vpop.f32.mrf.mxu0
    %v351 = vadd.f32 %v101, %v350
    %352 = vdwg.mxu0
    %353 = vmatpush.msra.mxu0 0.0
    %354 = vmatpush.msra.mxu0 0.0
    %355 = vmatpush.msra.mxu0 0.0
    %356 = vmatpush.msra.mxu0 0.0
    %357 = vmatpush.msra.mxu0 0.0
    %358 = vmatpush.msra.mxu0 0.0
    %359 = vmatpush.msra.mxu0 0.0
    %360 = vmatpush.msra.mxu0 0.0
    %361 = vmatpush.msra.mxu0 0.0
    %362 = vmatpush.msra.mxu0 0.0
    %363 = vmatpush.msra.mxu0 0.0
    %364 = vmatpush.msra.mxu0 0.0
    %365 = vmatpush.msra.mxu0 %v36
    %366 = vmatpush.msra.mxu0 %v35
    %367 = vmatpush.msra.mxu0 %v34
    %368 = vmatpush.msra.mxu0 %v33
    %369 = vmatmul.f32.gmra.mxu0 %v191
    %v370 = vpop.f32.mrf.mxu0
    %v371 = vadd.f32 %v98, %v370
    %372 = vdwg.mxu0
    %373 = vmatpush.msra.mxu0 0.0
    %374 = vmatpush.msra.mxu0 0.0
    %375 = vmatpush.msra.mxu0 0.0
    %376 = vmatpush.msra.mxu0 0.0
    %377 = vmatpush.msra.mxu0 0.0
    %378 = vmatpush.msra.mxu0 0.0
    %379 = vmatpush.msra.mxu0 0.0
    %380 = vmatpush.msra.mxu0 0.0
    %381 = vmatpush.msra.mxu0 0.0
    %382 = vmatpush.msra.mxu0 0.0
    %383 = vmatpush.msra.mxu0 0.0
    %384 = vmatpush.msra.mxu0 0.0
    %385 = vmatpush.msra.mxu0 %v40
    %386 = vmatpush.msra.mxu0 %v39
    %387 = vmatpush.msra.mxu0 %v38
    %388 = vmatpush.msra.mxu0 %v37
    %389 = vmatmul.f32.gmra.mxu0 %v191
    %v390 = vpop.f32.mrf.mxu0
    %v391 = vadd.f32 %v99, %v390
    %392 = vdwg.mxu0
    %393 = vmatpush.msra.mxu0 0.0
    %394 = vmatpush.msra.mxu0 0.0
    %395 = vmatpush.msra.mxu0 0.0
    %396 = vmatpush.msra.mxu0 0.0
    %397 = vmatpush.msra.mxu0 0.0
    %398 = vmatpush.msra.mxu0 0.0
    %399 = vmatpush.msra.mxu0 0.0
    %400 = vmatpush.msra.mxu0 0.0
    %401 = vmatpush.msra.mxu0 0.0
    %402 = vmatpush.msra.mxu0 0.0
    %403 = vmatpush.msra.mxu0 0.0
    %404 = vmatpush.msra.mxu0 0.0
    %405 = vmatpush.msra.mxu0 %v44
    %406 = vmatpush.msra.mxu0 %v43
    %407 = vmatpush.msra.mxu0 %v42
    %408 = vmatpush.msra.mxu0 %v41
    %409 = vmatmul.f32.gmra.mxu0 %v191
    %v410 = vpop.f32.mrf.mxu0
    %v411 = vadd.f32 %v100, %v410
    %412 = vdwg.mxu0
    %413 = vmatpush.msra.mxu0 0.0
    %414 = vmatpush.msra.mxu0 0.0
    %415 = vmatpush.msra.mxu0 0.0
    %416 = vmatpush.msra.mxu0 0.0
    %417 = vmatpush.msra.mxu0 0.0
    %418 = vmatpush.msra.mxu0 0.0
    %419 = vmatpush.msra.mxu0 0.0
    %420 = vmatpush.msra.mxu0 0.0
    %421 = vmatpush.msra.mxu0 0.0
    %422 = vmatpush.msra.mxu0 0.0
    %423 = vmatpush.msra.mxu0 0.0
    %424 = vmatpush.msra.mxu0 0.0
    %425 = vmatpush.msra.mxu0 %v48
    %426 = vmatpush.msra.mxu0 %v47
    %427 = vmatpush.msra.mxu0 %v46
    %428 = vmatpush.msra.mxu0 %v45
    %429 = vmatmul.f32.gmra.mxu0 %v191
    %v430 = vpop.f32.mrf.mxu0
    %v431 = vadd.f32 %v101, %v430
    %432 = vdwg.mxu0
    %433 = vmatpush.msra.mxu0 0.0
    %434 = vmatpush.msra.mxu0 0.0
    %435 = vmatpush.msra.mxu0 0.0
    %436 = vmatpush.msra.mxu0 0.0
    %437 = vmatpush.msra.mxu0 0.0
    %438 = vmatpush.msra.mxu0 0.0
    %439 = vmatpush.msra.mxu0 0.0
    %440 = vmatpush.msra.mxu0 0.0
    %441 = vmatpush.msra.mxu0 0.0
    %442 = vmatpush.msra.mxu0 0.0
    %443 = vmatpush.msra.mxu0 0.0
    %444 = vmatpush.msra.mxu0 0.0
    %445 = vmatpush.msra.mxu0 %v52
    %446 = vmatpush.msra.mxu0 %v51
    %447 = vmatpush.msra.mxu0 %v50
    %448 = vmatpush.msra.mxu0 %v49
    %449 = vmatmul.f32.gmra.mxu0 %v108
    %v450 = vpop.f32.mrf.mxu0
    %v451 = vadd.f32 %v102, %v450
    %452 = vdwg.mxu0
    %453 = vmatpush.msra.mxu0 0.0
    %454 = vmatpush.msra.mxu0 0.0
    %455 = vmatpush.msra.mxu0 0.0
    %456 = vmatpush.msra.mxu0 0.0
    %457 = vmatpush.msra.mxu0 0.0
    %458 = vmatpush.msra.mxu0 0.0
    %459 = vmatpush.msra.mxu0 0.0
    %460 = vmatpush.msra.mxu0 0.0
    %461 = vmatpush.msra.mxu0 0.0
    %462 = vmatpush.msra.mxu0 0.0
    %463 = vmatpush.msra.mxu0 0.0
    %464 = vmatpush.msra.mxu0 0.0
    %465 = vmatpush.msra.mxu0 %v56
    %466 = vmatpush.msra.mxu0 %v55
    %467 = vmatpush.msra.mxu0 %v54
    %468 = vmatpush.msra.mxu0 %v53
    %469 = vmatmul.f32.gmra.mxu0 %v108
    %v470 = vpop.f32.mrf.mxu0
    %v471 = vadd.f32 %v103, %v470
    %472 = vdwg.mxu0
    %473 = vmatpush.msra.mxu0 0.0
    %474 = vmatpush.msra.mxu0 0.0
    %475 = vmatpush.msra.mxu0 0.0
    %476 = vmatpush.msra.mxu0 0.0
    %477 = vmatpush.msra.mxu0 0.0
    %478 = vmatpush.msra.mxu0 0.0
    %479 = vmatpush.msra.mxu0 0.0
    %480 = vmatpush.msra.mxu0 0.0
    %481 = vmatpush.msra.mxu0 0.0
    %482 = vmatpush.msra.mxu0 0.0
    %483 = vmatpush.msra.mxu0 0.0
    %484 = vmatpush.msra.mxu0 0.0
    %485 = vmatpush.msra.mxu0 %v60
    %486 = vmatpush.msra.mxu0 %v59
    %487 = vmatpush.msra.mxu0 %v58
    %488 = vmatpush.msra.mxu0 %v57
    %489 = vmatmul.f32.gmra.mxu0 %v108
    %v490 = vpop.f32.mrf.mxu0
    %v491 = vadd.f32 %v104, %v490
    %492 = vdwg.mxu0
    %493 = vmatpush.msra.mxu0 0.0
    %494 = vmatpush.msra.mxu0 0.0
    %495 = vmatpush.msra.mxu0 0.0
    %496 = vmatpush.msra.mxu0 0.0
    %497 = vmatpush.msra.mxu0 0.0
    %498 = vmatpush.msra.mxu0 0.0
    %499 = vmatpush.msra.mxu0 0.0
    %500 = vmatpush.msra.mxu0 0.0
    %501 = vmatpush.msra.mxu0 0.0
    %502 = vmatpush.msra.mxu0 0.0
    %503 = vmatpush.msra.mxu0 0.0
    %504 = vmatpush.msra.mxu0 0.0
    %505 = vmatpush.msra.mxu0 %v64
    %506 = vmatpush.msra.mxu0 %v63
    %507 = vmatpush.msra.mxu0 %v62
    %508 = vmatpush.msra.mxu0 %v61
    %509 = vmatmul.f32.gmra.mxu0 %v108
    %v510 = vpop.f32.mrf.mxu0
    %v511 = vadd.f32 %v105, %v510
    %512 = vdwg.mxu0
    %513 = vmatpush.msra.mxu0 0.0
    %514 = vmatpush.msra.mxu0 0.0
    %515 = vmatpush.msra.mxu0 0.0
    %516 = vmatpush.msra.mxu0 0.0
    %517 = vmatpush.msra.mxu0 0.0
    %518 = vmatpush.msra.mxu0 0.0
    %519 = vmatpush.msra.mxu0 0.0
    %520 = vmatpush.msra.mxu0 0.0
    %521 = vmatpush.msra.mxu0 0.0
    %522 = vmatpush.msra.mxu0 0.0
    %523 = vmatpush.msra.mxu0 0.0
    %524 = vmatpush.msra.mxu0 0.0
    %525 = vmatpush.msra.mxu0 %v52
    %526 = vmatpush.msra.mxu0 %v51
    %527 = vmatpush.msra.mxu0 %v50
    %528 = vmatpush.msra.mxu0 %v49
    %529 = vmatmul.f32.gmra.mxu0 %v191
    %v530 = vpop.f32.mrf.mxu0
    %v531 = vadd.f32 %v102, %v530
    %532 = vdwg.mxu0
    %533 = vmatpush.msra.mxu0 0.0
    %534 = vmatpush.msra.mxu0 0.0
    %535 = vmatpush.msra.mxu0 0.0
    %536 = vmatpush.msra.mxu0 0.0
    %537 = vmatpush.msra.mxu0 0.0
    %538 = vmatpush.msra.mxu0 0.0
    %539 = vmatpush.msra.mxu0 0.0
    %540 = vmatpush.msra.mxu0 0.0
    %541 = vmatpush.msra.mxu0 0.0
    %542 = vmatpush.msra.mxu0 0.0
    %543 = vmatpush.msra.mxu0 0.0
    %544 = vmatpush.msra.mxu0 0.0
    %545 = vmatpush.msra.mxu0 %v56
    %546 = vmatpush.msra.mxu0 %v55
    %547 = vmatpush.msra.mxu0 %v54
    %548 = vmatpush.msra.mxu0 %v53
    %549 = vmatmul.f32.gmra.mxu0 %v191
    %v550 = vpop.f32.mrf.mxu0
    %v551 = vadd.f32 %v103, %v550
    %552 = vdwg.mxu0
    %553 = vmatpush.msra.mxu0 0.0
    %554 = vmatpush.msra.mxu0 0.0
    %555 = vmatpush.msra.mxu0 0.0
    %556 = vmatpush.msra.mxu0 0.0
    %557 = vmatpush.msra.mxu0 0.0
    %558 = vmatpush.msra.mxu0 0.0
    %559 = vmatpush.msra.mxu0 0.0
    %560 = vmatpush.msra.mxu0 0.0
    %561 = vmatpush.msra.mxu0 0.0
    %562 = vmatpush.msra.mxu0 0.0
    %563 = vmatpush.msra.mxu0 0.0
    %564 = vmatpush.msra.mxu0 0.0
    %565 = vmatpush.msra.mxu0 %v60
    %566 = vmatpush.msra.mxu0 %v59
    %567 = vmatpush.msra.mxu0 %v58
    %568 = vmatpush.msra.mxu0 %v57
    %569 = vmatmul.f32.gmra.mxu0 %v191
    %v570 = vpop.f32.mrf.mxu0
    %v571 = vadd.f32 %v104, %v570
    %572 = vdwg.mxu0
    %573 = vmatpush.msra.mxu0 0.0
    %574 = vmatpush.msra.mxu0 0.0
    %575 = vmatpush.msra.mxu0 0.0
    %576 = vmatpush.msra.mxu0 0.0
    %577 = vmatpush.msra.mxu0 0.0
    %578 = vmatpush.msra.mxu0 0.0
    %579 = vmatpush.msra.mxu0 0.0
    %580 = vmatpush.msra.mxu0 0.0
    %581 = vmatpush.msra.mxu0 0.0
    %582 = vmatpush.msra.mxu0 0.0
    %583 = vmatpush.msra.mxu0 0.0
    %584 = vmatpush.msra.mxu0 0.0
    %585 = vmatpush.msra.mxu0 %v64
    %586 = vmatpush.msra.mxu0 %v63
    %587 = vmatpush.msra.mxu0 %v62
    %588 = vmatpush.msra.mxu0 %v61
    %589 = vmatmul.f32.gmra.mxu0 %v191
    %v590 = vpop.f32.mrf.mxu0
    %v591 = vadd.f32 %v105, %v590
    %592 = vdwg.mxu0
    %vm593 = vcmask 64512
    %v595 = vsel %vm593, %v128, 0
    %v598 = vsel %vm593, %v291, 0
    %600 = vmatpush.xpose.msra.mxu0 0.0
    %601 = vmatpush.xpose.msra.mxu0 0.0
    %602 = vmatpush.xpose.msra.mxu0 0.0
    %603 = vmatpush.xpose.msra.mxu0 0.0
    %604 = vmatpush.xpose.msra.mxu0 0.0
    %605 = vmatpush.xpose.msra.mxu0 0.0
    %606 = vmatpush.xpose.msra.mxu0 0.0
    %607 = vmatpush.xpose.msra.mxu0 0.0
    %608 = vmatpush.xpose.msra.mxu0 0.0
    %609 = vmatpush.xpose.msra.mxu0 0.0
    %610 = vmatpush.xpose.msra.mxu0 0.0
    %611 = vmatpush.xpose.msra.mxu0 0.0
    %612 = vmatpush.xpose.msra.mxu0 0.0
    %613 = vmatpush.xpose.msra.mxu0 0.0
    %614 = vmatpush.xpose.msra.mxu0 0.0
    %615 = vmatpush.xpose.msra.mxu0 %v598
    %616 = vmatmul.f32.gmra.mxu0 %v595
    %v617 = vpop.f32.mrf.mxu0
    %v618 = vadd.f32 0.0, %v617
    %619 = vdwg.mxu0
    %v621 = vsel %vm593, %v148, 0
    %v624 = vsel %vm593, %v311, 0
    %626 = vmatpush.xpose.msra.mxu0 0.0
    %627 = vmatpush.xpose.msra.mxu0 0.0
    %628 = vmatpush.xpose.msra.mxu0 0.0
    %629 = vmatpush.xpose.msra.mxu0 0.0
    %630 = vmatpush.xpose.msra.mxu0 0.0
    %631 = vmatpush.xpose.msra.mxu0 0.0
    %632 = vmatpush.xpose.msra.mxu0 0.0
    %633 = vmatpush.xpose.msra.mxu0 0.0
    %634 = vmatpush.xpose.msra.mxu0 0.0
    %635 = vmatpush.xpose.msra.mxu0 0.0
    %636 = vmatpush.xpose.msra.mxu0 0.0
    %637 = vmatpush.xpose.msra.mxu0 0.0
    %638 = vmatpush.xpose.msra.mxu0 0.0
    %639 = vmatpush.xpose.msra.mxu0 0.0
    %640 = vmatpush.xpose.msra.mxu0 0.0
    %641 = vmatpush.xpose.msra.mxu0 %v624
    %642 = vmatmul.f32.gmra.mxu0 %v621
    %v643 = vpop.f32.mrf.mxu0
    %v644 = vadd.f32 0.0, %v643
    %645 = vdwg.mxu0
    %v647 = vsel %vm593, %v168, 0
    %v650 = vsel %vm593, %v331, 0
    %652 = vmatpush.xpose.msra.mxu0 0.0
    %653 = vmatpush.xpose.msra.mxu0 0.0
    %654 = vmatpush.xpose.msra.mxu0 0.0
    %655 = vmatpush.xpose.msra.mxu0 0.0
    %656 = vmatpush.xpose.msra.mxu0 0.0
    %657 = vmatpush.xpose.msra.mxu0 0.0
    %658 = vmatpush.xpose.msra.mxu0 0.0
    %659 = vmatpush.xpose.msra.mxu0 0.0
    %660 = vmatpush.xpose.msra.mxu0 0.0
    %661 = vmatpush.xpose.msra.mxu0 0.0
    %662 = vmatpush.xpose.msra.mxu0 0.0
    %663 = vmatpush.xpose.msra.mxu0 0.0
    %664 = vmatpush.xpose.msra.mxu0 0.0
    %665 = vmatpush.xpose.msra.mxu0 0.0
    %666 = vmatpush.xpose.msra.mxu0 0.0
    %667 = vmatpush.xpose.msra.mxu0 %v650
    %668 = vmatmul.f32.gmra.mxu0 %v647
    %v669 = vpop.f32.mrf.mxu0
    %v670 = vadd.f32 0.0, %v669
    %671 = vdwg.mxu0
    %v673 = vsel %vm593, %v188, 0
    %v676 = vsel %vm593, %v351, 0
    %678 = vmatpush.xpose.msra.mxu0 0.0
    %679 = vmatpush.xpose.msra.mxu0 0.0
    %680 = vmatpush.xpose.msra.mxu0 0.0
    %681 = vmatpush.xpose.msra.mxu0 0.0
    %682 = vmatpush.xpose.msra.mxu0 0.0
    %683 = vmatpush.xpose.msra.mxu0 0.0
    %684 = vmatpush.xpose.msra.mxu0 0.0
    %685 = vmatpush.xpose.msra.mxu0 0.0
    %686 = vmatpush.xpose.msra.mxu0 0.0
    %687 = vmatpush.xpose.msra.mxu0 0.0
    %688 = vmatpush.xpose.msra.mxu0 0.0
    %689 = vmatpush.xpose.msra.mxu0 0.0
    %690 = vmatpush.xpose.msra.mxu0 0.0
    %691 = vmatpush.xpose.msra.mxu0 0.0
    %692 = vmatpush.xpose.msra.mxu0 0.0
    %693 = vmatpush.xpose.msra.mxu0 %v676
    %694 = vmatmul.f32.gmra.mxu0 %v673
    %v695 = vpop.f32.mrf.mxu0
    %v696 = vadd.f32 0.0, %v695
    %697 = vdwg.mxu0
    %v699 = vsel %vm593, %v211, 0
    %v702 = vsel %vm593, %v371, 0
    %704 = vmatpush.xpose.msra.mxu0 0.0
    %705 = vmatpush.xpose.msra.mxu0 0.0
    %706 = vmatpush.xpose.msra.mxu0 0.0
    %707 = vmatpush.xpose.msra.mxu0 0.0
    %708 = vmatpush.xpose.msra.mxu0 0.0
    %709 = vmatpush.xpose.msra.mxu0 0.0
    %710 = vmatpush.xpose.msra.mxu0 0.0
    %711 = vmatpush.xpose.msra.mxu0 0.0
    %712 = vmatpush.xpose.msra.mxu0 0.0
    %713 = vmatpush.xpose.msra.mxu0 0.0
    %714 = vmatpush.xpose.msra.mxu0 0.0
    %715 = vmatpush.xpose.msra.mxu0 0.0
    %716 = vmatpush.xpose.msra.mxu0 0.0
    %717 = vmatpush.xpose.msra.mxu0 0.0
    %718 = vmatpush.xpose.msra.mxu0 0.0
    %719 = vmatpush.xpose.msra.mxu0 %v702
    %720 = vmatmul.f32.gmra.mxu0 %v699
    %v721 = vpop.f32.mrf.mxu0
    %v722 = vadd.f32 0.0, %v721
    %723 = vdwg.mxu0
    %v725 = vsel %vm593, %v231, 0
    %v728 = vsel %vm593, %v391, 0
    %730 = vmatpush.xpose.msra.mxu0 0.0
    %731 = vmatpush.xpose.msra.mxu0 0.0
    %732 = vmatpush.xpose.msra.mxu0 0.0
    %733 = vmatpush.xpose.msra.mxu0 0.0
    %734 = vmatpush.xpose.msra.mxu0 0.0
    %735 = vmatpush.xpose.msra.mxu0 0.0
    %736 = vmatpush.xpose.msra.mxu0 0.0
    %737 = vmatpush.xpose.msra.mxu0 0.0
    %738 = vmatpush.xpose.msra.mxu0 0.0
    %739 = vmatpush.xpose.msra.mxu0 0.0
    %740 = vmatpush.xpose.msra.mxu0 0.0
    %741 = vmatpush.xpose.msra.mxu0 0.0
    %742 = vmatpush.xpose.msra.mxu0 0.0
    %743 = vmatpush.xpose.msra.mxu0 0.0
    %744 = vmatpush.xpose.msra.mxu0 0.0
    %745 = vmatpush.xpose.msra.mxu0 %v728
    %746 = vmatmul.f32.gmra.mxu0 %v725
    %v747 = vpop.f32.mrf.mxu0
    %v748 = vadd.f32 0.0, %v747
    %749 = vdwg.mxu0
    %v751 = vsel %vm593, %v251, 0
    %v754 = vsel %vm593, %v411, 0
    %756 = vmatpush.xpose.msra.mxu0 0.0
    %757 = vmatpush.xpose.msra.mxu0 0.0
    %758 = vmatpush.xpose.msra.mxu0 0.0
    %759 = vmatpush.xpose.msra.mxu0 0.0
    %760 = vmatpush.xpose.msra.mxu0 0.0
    %761 = vmatpush.xpose.msra.mxu0 0.0
    %762 = vmatpush.xpose.msra.mxu0 0.0
    %763 = vmatpush.xpose.msra.mxu0 0.0
    %764 = vmatpush.xpose.msra.mxu0 0.0
    %765 = vmatpush.xpose.msra.mxu0 0.0
    %766 = vmatpush.xpose.msra.mxu0 0.0
    %767 = vmatpush.xpose.msra.mxu0 0.0
    %768 = vmatpush.xpose.msra.mxu0 0.0
    %769 = vmatpush.xpose.msra.mxu0 0.0
    %770 = vmatpush.xpose.msra.mxu0 0.0
    %771 = vmatpush.xpose.msra.mxu0 %v754
    %772 = vmatmul.f32.gmra.mxu0 %v751
    %v773 = vpop.f32.mrf.mxu0
    %v774 = vadd.f32 0.0, %v773
    %775 = vdwg.mxu0
    %v777 = vsel %vm593, %v271, 0
    %v780 = vsel %vm593, %v431, 0
    %782 = vmatpush.xpose.msra.mxu0 0.0
    %783 = vmatpush.xpose.msra.mxu0 0.0
    %784 = vmatpush.xpose.msra.mxu0 0.0
    %785 = vmatpush.xpose.msra.mxu0 0.0
    %786 = vmatpush.xpose.msra.mxu0 0.0
    %787 = vmatpush.xpose.msra.mxu0 0.0
    %788 = vmatpush.xpose.msra.mxu0 0.0
    %789 = vmatpush.xpose.msra.mxu0 0.0
    %790 = vmatpush.xpose.msra.mxu0 0.0
    %791 = vmatpush.xpose.msra.mxu0 0.0
    %792 = vmatpush.xpose.msra.mxu0 0.0
    %793 = vmatpush.xpose.msra.mxu0 0.0
    %794 = vmatpush.xpose.msra.mxu0 0.0
    %795 = vmatpush.xpose.msra.mxu0 0.0
    %796 = vmatpush.xpose.msra.mxu0 0.0
    %797 = vmatpush.xpose.msra.mxu0 %v780
    %798 = vmatmul.f32.gmra.mxu0 %v777
    %v799 = vpop.f32.mrf.mxu0
    %v800 = vadd.f32 0.0, %v799
    %801 = vdwg.mxu0
    %v802 = vsel %vm593, %v618, -inf
    %803 = vmax.xlane.f32.xlu0 %v802
    %v804 = vpop.xlane.xlu0 %803
    %v805 = vsel %vm593, %v644, -inf
    %806 = vmax.xlane.f32.xlu0 %v805
    %v807 = vpop.xlane.xlu0 %806
    %v808 = vsel %vm593, %v670, -inf
    %809 = vmax.xlane.f32.xlu0 %v808
    %v810 = vpop.xlane.xlu0 %809
    %v811 = vsel %vm593, %v696, -inf
    %812 = vmax.xlane.f32.xlu0 %v811
    %v813 = vpop.xlane.xlu0 %812
    %v814 = vsel %vm593, %v722, -inf
    %815 = vmax.xlane.f32.xlu0 %v814
    %v816 = vpop.xlane.xlu0 %815
    %v817 = vsel %vm593, %v748, -inf
    %818 = vmax.xlane.f32.xlu0 %v817
    %v819 = vpop.xlane.xlu0 %818
    %v820 = vsel %vm593, %v774, -inf
    %821 = vmax.xlane.f32.xlu0 %v820
    %v822 = vpop.xlane.xlu0 %821
    %v823 = vsel %vm593, %v800, -inf
    %824 = vmax.xlane.f32.xlu0 %v823
    %v825 = vpop.xlane.xlu0 %824
    %v826 = vsub.f32 %v618, %v804
    %v827 = vsub.f32 %v644, %v807
    %v828 = vsub.f32 %v670, %v810
    %v829 = vsub.f32 %v696, %v813
    %v830 = vsub.f32 %v722, %v816
    %v831 = vsub.f32 %v748, %v819
    %v832 = vsub.f32 %v774, %v822
    %v833 = vsub.f32 %v800, %v825
    %v834 = vmul.f32 %v826, 1.442695
    %v835 = vpow.pop %v834
    %v836 = vmul.f32 %v827, 1.442695
    %v837 = vpow.pop %v836
    %v838 = vmul.f32 %v828, 1.442695
    %v839 = vpow.pop %v838
    %v840 = vmul.f32 %v829, 1.442695
    %v841 = vpow.pop %v840
    %v842 = vmul.f32 %v830, 1.442695
    %v843 = vpow.pop %v842
    %v844 = vmul.f32 %v831, 1.442695
    %v845 = vpow.pop %v844
    %v846 = vmul.f32 %v832, 1.442695
    %v847 = vpow.pop %v846
    %v848 = vmul.f32 %v833, 1.442695
    %v849 = vpow.pop %v848
    %v850 = vsel %vm593, %v835, 0.0
    %851 = vadd.xlane.f32.xlu0 %v850
    %v852 = vpop.xlane.xlu0 %851
    %v853 = vsel %vm593, %v837, 0.0
    %854 = vadd.xlane.f32.xlu0 %v853
    %v855 = vpop.xlane.xlu0 %854
    %v856 = vsel %vm593, %v839, 0.0
    %857 = vadd.xlane.f32.xlu0 %v856
    %v858 = vpop.xlane.xlu0 %857
    %v859 = vsel %vm593, %v841, 0.0
    %860 = vadd.xlane.f32.xlu0 %v859
    %v861 = vpop.xlane.xlu0 %860
    %v862 = vsel %vm593, %v843, 0.0
    %863 = vadd.xlane.f32.xlu0 %v862
    %v864 = vpop.xlane.xlu0 %863
    %v865 = vsel %vm593, %v845, 0.0
    %866 = vadd.xlane.f32.xlu0 %v865
    %v867 = vpop.xlane.xlu0 %866
    %v868 = vsel %vm593, %v847, 0.0
    %869 = vadd.xlane.f32.xlu0 %v868
    %v870 = vpop.xlane.xlu0 %869
    %v871 = vsel %vm593, %v849, 0.0
    %872 = vadd.xlane.f32.xlu0 %v871
    %v873 = vpop.xlane.xlu0 %872
    %v874 = vrcp.pop %v852
    %v875 = vrcp.pop %v855
    %v876 = vrcp.pop %v858
    %v877 = vrcp.pop %v861
    %v878 = vrcp.pop %v864
    %v879 = vrcp.pop %v867
    %v880 = vrcp.pop %v870
    %v881 = vrcp.pop %v873
    %v882 = vmul.f32 %v835, %v874
    %v883 = vmul.f32 %v837, %v875
    %v884 = vmul.f32 %v839, %v876
    %v885 = vmul.f32 %v841, %v877
    %v886 = vmul.f32 %v843, %v878
    %v887 = vmul.f32 %v845, %v879
    %v888 = vmul.f32 %v847, %v880
    %v889 = vmul.f32 %v849, %v881
    %v891 = vsel %vm593, %v882, 0
    %893 = vmatpush.msra.mxu0 0.0
    %894 = vmatpush.msra.mxu0 0.0
    %895 = vmatpush.msra.mxu0 0.0
    %896 = vmatpush.msra.mxu0 0.0
    %897 = vmatpush.msra.mxu0 0.0
    %898 = vmatpush.msra.mxu0 0.0
    %899 = vmatpush.msra.mxu0 0.0
    %900 = vmatpush.msra.mxu0 0.0
    %901 = vmatpush.msra.mxu0 0.0
    %902 = vmatpush.msra.mxu0 0.0
    %903 = vmatpush.msra.mxu0 0.0
    %904 = vmatpush.msra.mxu0 0.0
    %905 = vmatpush.msra.mxu0 0.0
    %906 = vmatpush.msra.mxu0 0.0
    %907 = vmatpush.msra.mxu0 0.0
    %908 = vmatpush.msra.mxu0 %v451
    %909 = vmatmul.f32.gmra.mxu0 %v891
    %v910 = vpop.f32.mrf.mxu0
    %v911 = vadd.f32 0.0, %v910
    %912 = vdwg.mxu0
    %v914 = vsel %vm593, %v883, 0
    %916 = vmatpush.msra.mxu0 0.0
    %917 = vmatpush.msra.mxu0 0.0
    %918 = vmatpush.msra.mxu0 0.0
    %919 = vmatpush.msra.mxu0 0.0
    %920 = vmatpush.msra.mxu0 0.0
    %921 = vmatpush.msra.mxu0 0.0
    %922 = vmatpush.msra.mxu0 0.0
    %923 = vmatpush.msra.mxu0 0.0
    %924 = vmatpush.msra.mxu0 0.0
    %925 = vmatpush.msra.mxu0 0.0
    %926 = vmatpush.msra.mxu0 0.0
    %927 = vmatpush.msra.mxu0 0.0
    %928 = vmatpush.msra.mxu0 0.0
    %929 = vmatpush.msra.mxu0 0.0
    %930 = vmatpush.msra.mxu0 0.0
    %931 = vmatpush.msra.mxu0 %v471
    %932 = vmatmul.f32.gmra.mxu0 %v914
    %v933 = vpop.f32.mrf.mxu0
    %v934 = vadd.f32 0.0, %v933
    %935 = vdwg.mxu0
    %v937 = vsel %vm593, %v884, 0
    %939 = vmatpush.msra.mxu0 0.0
    %940 = vmatpush.msra.mxu0 0.0
    %941 = vmatpush.msra.mxu0 0.0
    %942 = vmatpush.msra.mxu0 0.0
    %943 = vmatpush.msra.mxu0 0.0
    %944 = vmatpush.msra.mxu0 0.0
    %945 = vmatpush.msra.mxu0 0.0
    %946 = vmatpush.msra.mxu0 0.0
    %947 = vmatpush.msra.mxu0 0.0
    %948 = vmatpush.msra.mxu0 0.0
    %949 = vmatpush.msra.mxu0 0.0
    %950 = vmatpush.msra.mxu0 0.0
    %951 = vmatpush.msra.mxu0 0.0
    %952 = vmatpush.msra.mxu0 0.0
    %953 = vmatpush.msra.mxu0 0.0
    %954 = vmatpush.msra.mxu0 %v491
    %955 = vmatmul.f32.gmra.mxu0 %v937
    %v956 = vpop.f32.mrf.mxu0
    %v957 = vadd.f32 0.0, %v956
    %958 = vdwg.mxu0
    %v960 = vsel %vm593, %v885, 0
    %962 = vmatpush.msra.mxu0 0.0
    %963 = vmatpush.msra.mxu0 0.0
    %964 = vmatpush.msra.mxu0 0.0
    %965 = vmatpush.msra.mxu0 0.0
    %966 = vmatpush.msra.mxu0 0.0
    %967 = vmatpush.msra.mxu0 0.0
    %968 = vmatpush.msra.mxu0 0.0
    %969 = vmatpush.msra.mxu0 0.0
    %970 = vmatpush.msra.mxu0 0.0
    %971 = vmatpush.msra.mxu0 0.0
    %972 = vmatpush.msra.mxu0 0.0
    %973 = vmatpush.msra.mxu0 0.0
    %974 = vmatpush.msra.mxu0 0.0
    %975 = vmatpush.msra.mxu0 0.0
    %976 = vmatpush.msra.mxu0 0.0
    %977 = vmatpush.msra.mxu0 %v511
    %978 = vmatmul.f32.gmra.mxu0 %v960
    %v979 = vpop.f32.mrf.mxu0
    %v980 = vadd.f32 0.0, %v979
    %981 = vdwg.mxu0
    %v983 = vsel %vm593, %v886, 0
    %985 = vmatpush.msra.mxu0 0.0
    %986 = vmatpush.msra.mxu0 0.0
    %987 = vmatpush.msra.mxu0 0.0
    %988 = vmatpush.msra.mxu0 0.0
    %989 = vmatpush.msra.mxu0 0.0
    %990 = vmatpush.msra.mxu0 0.0
    %991 = vmatpush.msra.mxu0 0.0
    %992 = vmatpush.msra.mxu0 0.0
    %993 = vmatpush.msra.mxu0 0.0
    %994 = vmatpush.msra.mxu0 0.0
    %995 = vmatpush.msra.mxu0 0.0
    %996 = vmatpush.msra.mxu0 0.0
    %997 = vmatpush.msra.mxu0 0.0
    %998 = vmatpush.msra.mxu0 0.0
    %999 = vmatpush.msra.mxu0 0.0
    %1000 = vmatpush.msra.mxu0 %v531
    %1001 = vmatmul.f32.gmra.mxu0 %v983
    %v1002 = vpop.f32.mrf.mxu0
    %v1003 = vadd.f32 0.0, %v1002
    %1004 = vdwg.mxu0
    %v1006 = vsel %vm593, %v887, 0
    %1008 = vmatpush.msra.mxu0 0.0
    %1009 = vmatpush.msra.mxu0 0.0
    %1010 = vmatpush.msra.mxu0 0.0
    %1011 = vmatpush.msra.mxu0 0.0
    %1012 = vmatpush.msra.mxu0 0.0
    %1013 = vmatpush.msra.mxu0 0.0
    %1014 = vmatpush.msra.mxu0 0.0
    %1015 = vmatpush.msra.mxu0 0.0
    %1016 = vmatpush.msra.mxu0 0.0
    %1017 = vmatpush.msra.mxu0 0.0
    %1018 = vmatpush.msra.mxu0 0.0
    %1019 = vmatpush.msra.mxu0 0.0
    %1020 = vmatpush.msra.mxu0 0.0
    %1021 = vmatpush.msra.mxu0 0.0
    %1022 = vmatpush.msra.mxu0 0.0
    %1023 = vmatpush.msra.mxu0 %v551
    %1024 = vmatmul.f32.gmra.mxu0 %v1006
    %v1025 = vpop.f32.mrf.mxu0
    %v1026 = vadd.f32 0.0, %v1025
    %1027 = vdwg.mxu0
    %v1029 = vsel %vm593, %v888, 0
    %1031 = vmatpush.msra.mxu0 0.0
    %1032 = vmatpush.msra.mxu0 0.0
    %1033 = vmatpush.msra.mxu0 0.0
    %1034 = vmatpush.msra.mxu0 0.0
    %1035 = vmatpush.msra.mxu0 0.0
    %1036 = vmatpush.msra.mxu0 0.0
    %1037 = vmatpush.msra.mxu0 0.0
    %1038 = vmatpush.msra.mxu0 0.0
    %1039 = vmatpush.msra.mxu0 0.0
    %1040 = vmatpush.msra.mxu0 0.0
    %1041 = vmatpush.msra.mxu0 0.0
    %1042 = vmatpush.msra.mxu0 0.0
    %1043 = vmatpush.msra.mxu0 0.0
    %1044 = vmatpush.msra.mxu0 0.0
    %1045 = vmatpush.msra.mxu0 0.0
    %1046 = vmatpush.msra.mxu0 %v571
    %1047 = vmatmul.f32.gmra.mxu0 %v1029
    %v1048 = vpop.f32.mrf.mxu0
    %v1049 = vadd.f32 0.0, %v1048
    %1050 = vdwg.mxu0
    %v1052 = vsel %vm593, %v889, 0
    %1054 = vmatpush.msra.mxu0 0.0
    %1055 = vmatpush.msra.mxu0 0.0
    %1056 = vmatpush.msra.mxu0 0.0
    %1057 = vmatpush.msra.mxu0 0.0
    %1058 = vmatpush.msra.mxu0 0.0
    %1059 = vmatpush.msra.mxu0 0.0
    %1060 = vmatpush.msra.mxu0 0.0
    %1061 = vmatpush.msra.mxu0 0.0
    %1062 = vmatpush.msra.mxu0 0.0
    %1063 = vmatpush.msra.mxu0 0.0
    %1064 = vmatpush.msra.mxu0 0.0
    %1065 = vmatpush.msra.mxu0 0.0
    %1066 = vmatpush.msra.mxu0 0.0
    %1067 = vmatpush.msra.mxu0 0.0
    %1068 = vmatpush.msra.mxu0 0.0
    %1069 = vmatpush.msra.mxu0 %v591
    %1070 = vmatmul.f32.gmra.mxu0 %v1052
    %v1071 = vpop.f32.mrf.mxu0
    %v1072 = vadd.f32 0.0, %v1071
    %1073 = vdwg.mxu0
    %v1075 = vsel %vm593, %v911, 0
    %v1078 = vsel %vm593, %v78, 0
    %v1081 = vsel %vm593, %v79, 0
    %v1084 = vsel %vm593, %v80, 0
    %v1087 = vsel %vm593, %v81, 0
    %1089 = vmatpush.xpose.msra.mxu0 0.0
    %1090 = vmatpush.xpose.msra.mxu0 0.0
    %1091 = vmatpush.xpose.msra.mxu0 0.0
    %1092 = vmatpush.xpose.msra.mxu0 0.0
    %1093 = vmatpush.xpose.msra.mxu0 0.0
    %1094 = vmatpush.xpose.msra.mxu0 0.0
    %1095 = vmatpush.xpose.msra.mxu0 0.0
    %1096 = vmatpush.xpose.msra.mxu0 0.0
    %1097 = vmatpush.xpose.msra.mxu0 0.0
    %1098 = vmatpush.xpose.msra.mxu0 0.0
    %1099 = vmatpush.xpose.msra.mxu0 0.0
    %1100 = vmatpush.xpose.msra.mxu0 0.0
    %1101 = vmatpush.xpose.msra.mxu0 %v1087
    %1102 = vmatpush.xpose.msra.mxu0 %v1084
    %1103 = vmatpush.xpose.msra.mxu0 %v1081
    %1104 = vmatpush.xpose.msra.mxu0 %v1078
    %1105 = vmatmul.f32.gmra.mxu0 %v1075
    %v1106 = vpop.f32.mrf.mxu0
    %v1107 = vadd.f32 0.0, %v1106
    %1108 = vdwg.mxu0
    %v1110 = vsel %vm593, %v934, 0
    %v1113 = vsel %vm593, %v82, 0
    %v1116 = vsel %vm593, %v83, 0
    %v1119 = vsel %vm593, %v84, 0
    %v1122 = vsel %vm593, %v85, 0
    %1124 = vmatpush.xpose.msra.mxu0 0.0
    %1125 = vmatpush.xpose.msra.mxu0 0.0
    %1126 = vmatpush.xpose.msra.mxu0 0.0
    %1127 = vmatpush.xpose.msra.mxu0 0.0
    %1128 = vmatpush.xpose.msra.mxu0 0.0
    %1129 = vmatpush.xpose.msra.mxu0 0.0
    %1130 = vmatpush.xpose.msra.mxu0 0.0
    %1131 = vmatpush.xpose.msra.mxu0 0.0
    %1132 = vmatpush.xpose.msra.mxu0 0.0
    %1133 = vmatpush.xpose.msra.mxu0 0.0
    %1134 = vmatpush.xpose.msra.mxu0 0.0
    %1135 = vmatpush.xpose.msra.mxu0 0.0
    %1136 = vmatpush.xpose.msra.mxu0 %v1122
    %1137 = vmatpush.xpose.msra.mxu0 %v1119
    %1138 = vmatpush.xpose.msra.mxu0 %v1116
    %1139 = vmatpush.xpose.msra.mxu0 %v1113
    %1140 = vmatmul.f32.gmra.mxu0 %v1110
    %v1141 = vpop.f32.mrf.mxu0
    %v1142 = vadd.f32 0.0, %v1141
    %1143 = vdwg.mxu0
    %v1145 = vsel %vm593, %v957, 0
    %v1148 = vsel %vm593, %v86, 0
    %v1151 = vsel %vm593, %v87, 0
    %v1154 = vsel %vm593, %v88, 0
    %v1157 = vsel %vm593, %v89, 0
    %1159 = vmatpush.xpose.msra.mxu0 0.0
    %1160 = vmatpush.xpose.msra.mxu0 0.0
    %1161 = vmatpush.xpose.msra.mxu0 0.0
    %1162 = vmatpush.xpose.msra.mxu0 0.0
    %1163 = vmatpush.xpose.msra.mxu0 0.0
    %1164 = vmatpush.xpose.msra.mxu0 0.0
    %1165 = vmatpush.xpose.msra.mxu0 0.0
    %1166 = vmatpush.xpose.msra.mxu0 0.0
    %1167 = vmatpush.xpose.msra.mxu0 0.0
    %1168 = vmatpush.xpose.msra.mxu0 0.0
    %1169 = vmatpush.xpose.msra.mxu0 0.0
    %1170 = vmatpush.xpose.msra.mxu0 0.0
    %1171 = vmatpush.xpose.msra.mxu0 %v1157
    %1172 = vmatpush.xpose.msra.mxu0 %v1154
    %1173 = vmatpush.xpose.msra.mxu0 %v1151
    %1174 = vmatpush.xpose.msra.mxu0 %v1148
    %1175 = vmatmul.f32.gmra.mxu0 %v1145
    %v1176 = vpop.f32.mrf.mxu0
    %v1177 = vadd.f32 0.0, %v1176
    %1178 = vdwg.mxu0
    %v1180 = vsel %vm593, %v980, 0
    %v1183 = vsel %vm593, %v90, 0
    %v1186 = vsel %vm593, %v91, 0
    %v1189 = vsel %vm593, %v92, 0
    %v1192 = vsel %vm593, %v93, 0
    %1194 = vmatpush.xpose.msra.mxu0 0.0
    %1195 = vmatpush.xpose.msra.mxu0 0.0
    %1196 = vmatpush.xpose.msra.mxu0 0.0
    %1197 = vmatpush.xpose.msra.mxu0 0.0
    %1198 = vmatpush.xpose.msra.mxu0 0.0
    %1199 = vmatpush.xpose.msra.mxu0 0.0
    %1200 = vmatpush.xpose.msra.mxu0 0.0
    %1201 = vmatpush.xpose.msra.mxu0 0.0
    %1202 = vmatpush.xpose.msra.mxu0 0.0
    %1203 = vmatpush.xpose.msra.mxu0 0.0
    %1204 = vmatpush.xpose.msra.mxu0 0.0
    %1205 = vmatpush.xpose.msra.mxu0 0.0
    %1206 = vmatpush.xpose.msra.mxu0 %v1192
    %1207 = vmatpush.xpose.msra.mxu0 %v1189
    %1208 = vmatpush.xpose.msra.mxu0 %v1186
    %1209 = vmatpush.xpose.msra.mxu0 %v1183
    %1210 = vmatmul.f32.gmra.mxu0 %v1180
    %v1211 = vpop.f32.mrf.mxu0
    %v1212 = vadd.f32 0.0, %v1211
    %1213 = vdwg.mxu0
    %v1215 = vsel %vm593, %v1003, 0
    %1217 = vmatpush.xpose.msra.mxu0 0.0
    %1218 = vmatpush.xpose.msra.mxu0 0.0
    %1219 = vmatpush.xpose.msra.mxu0 0.0
    %1220 = vmatpush.xpose.msra.mxu0 0.0
    %1221 = vmatpush.xpose.msra.mxu0 0.0
    %1222 = vmatpush.xpose.msra.mxu0 0.0
    %1223 = vmatpush.xpose.msra.mxu0 0.0
    %1224 = vmatpush.xpose.msra.mxu0 0.0
    %1225 = vmatpush.xpose.msra.mxu0 0.0
    %1226 = vmatpush.xpose.msra.mxu0 0.0
    %1227 = vmatpush.xpose.msra.mxu0 0.0
    %1228 = vmatpush.xpose.msra.mxu0 0.0
    %1229 = vmatpush.xpose.msra.mxu0 %v1087
    %1230 = vmatpush.xpose.msra.mxu0 %v1084
    %1231 = vmatpush.xpose.msra.mxu0 %v1081
    %1232 = vmatpush.xpose.msra.mxu0 %v1078
    %1233 = vmatmul.f32.gmra.mxu0 %v1215
    %v1234 = vpop.f32.mrf.mxu0
    %v1235 = vadd.f32 0.0, %v1234
    %1236 = vdwg.mxu0
    %v1238 = vsel %vm593, %v1026, 0
    %1240 = vmatpush.xpose.msra.mxu0 0.0
    %1241 = vmatpush.xpose.msra.mxu0 0.0
    %1242 = vmatpush.xpose.msra.mxu0 0.0
    %1243 = vmatpush.xpose.msra.mxu0 0.0
    %1244 = vmatpush.xpose.msra.mxu0 0.0
    %1245 = vmatpush.xpose.msra.mxu0 0.0
    %1246 = vmatpush.xpose.msra.mxu0 0.0
    %1247 = vmatpush.xpose.msra.mxu0 0.0
    %1248 = vmatpush.xpose.msra.mxu0 0.0
    %1249 = vmatpush.xpose.msra.mxu0 0.0
    %1250 = vmatpush.xpose.msra.mxu0 0.0
    %1251 = vmatpush.xpose.msra.mxu0 0.0
    %1252 = vmatpush.xpose.msra.mxu0 %v1122
    %1253 = vmatpush.xpose.msra.mxu0 %v1119
    %1254 = vmatpush.xpose.msra.mxu0 %v1116
    %1255 = vmatpush.xpose.msra.mxu0 %v1113
    %1256 = vmatmul.f32.gmra.mxu0 %v1238
    %v1257 = vpop.f32.mrf.mxu0
    %v1258 = vadd.f32 0.0, %v1257
    %1259 = vdwg.mxu0
    %v1261 = vsel %vm593, %v1049, 0
    %1263 = vmatpush.xpose.msra.mxu0 0.0
    %1264 = vmatpush.xpose.msra.mxu0 0.0
    %1265 = vmatpush.xpose.msra.mxu0 0.0
    %1266 = vmatpush.xpose.msra.mxu0 0.0
    %1267 = vmatpush.xpose.msra.mxu0 0.0
    %1268 = vmatpush.xpose.msra.mxu0 0.0
    %1269 = vmatpush.xpose.msra.mxu0 0.0
    %1270 = vmatpush.xpose.msra.mxu0 0.0
    %1271 = vmatpush.xpose.msra.mxu0 0.0
    %1272 = vmatpush.xpose.msra.mxu0 0.0
    %1273 = vmatpush.xpose.msra.mxu0 0.0
    %1274 = vmatpush.xpose.msra.mxu0 0.0
    %1275 = vmatpush.xpose.msra.mxu0 %v1157
    %1276 = vmatpush.xpose.msra.mxu0 %v1154
    %1277 = vmatpush.xpose.msra.mxu0 %v1151
    %1278 = vmatpush.xpose.msra.mxu0 %v1148
    %1279 = vmatmul.f32.gmra.mxu0 %v1261
    %v1280 = vpop.f32.mrf.mxu0
    %v1281 = vadd.f32 0.0, %v1280
    %1282 = vdwg.mxu0
    %v1284 = vsel %vm593, %v1072, 0
    %1286 = vmatpush.xpose.msra.mxu0 0.0
    %1287 = vmatpush.xpose.msra.mxu0 0.0
    %1288 = vmatpush.xpose.msra.mxu0 0.0
    %1289 = vmatpush.xpose.msra.mxu0 0.0
    %1290 = vmatpush.xpose.msra.mxu0 0.0
    %1291 = vmatpush.xpose.msra.mxu0 0.0
    %1292 = vmatpush.xpose.msra.mxu0 0.0
    %1293 = vmatpush.xpose.msra.mxu0 0.0
    %1294 = vmatpush.xpose.msra.mxu0 0.0
    %1295 = vmatpush.xpose.msra.mxu0 0.0
    %1296 = vmatpush.xpose.msra.mxu0 0.0
    %1297 = vmatpush.xpose.msra.mxu0 0.0
    %1298 = vmatpush.xpose.msra.mxu0 %v1192
    %1299 = vmatpush.xpose.msra.mxu0 %v1189
    %1300 = vmatpush.xpose.msra.mxu0 %v1186
    %1301 = vmatpush.xpose.msra.mxu0 %v1183
    %1302 = vmatmul.f32.gmra.mxu0 %v1284
    %v1303 = vpop.f32.mrf.mxu0
    %v1304 = vadd.f32 0.0, %v1303
    %1305 = vdwg.mxu0
    %v1306 = vsel %vm106, %v1107, 0.0
    %v1307 = vsel %vm106, %v1142, 0.0
    %v1308 = vadd.f32 %v1306, %v1307
    %v1309 = vsel %vm106, %v1177, 0.0
    %v1310 = vadd.f32 %v1308, %v1309
    %v1311 = vsel %vm106, %v1212, 0.0
    %v1312 = vadd.f32 %v1310, %v1311
    %v1313 = vsel %vm106, %v1235, 0.0
    %v1314 = vsel %vm106, %v1258, 0.0
    %v1315 = vadd.f32 %v1313, %v1314
    %v1316 = vsel %vm106, %v1281, 0.0
    %v1317 = vadd.f32 %v1315, %v1316
    %v1318 = vsel %vm106, %v1304, 0.0
    %v1319 = vadd.f32 %v1317, %v1318
    %v1320 = vld [vmem:[%s2] sm:$0xff]
    %v1321 = vld [vmem:[%s2 + $0x8] sm:$0xff]
    %v1322 = vld [vmem:[%s2 + $0x10] sm:$0xff]
    %v1323 = vld [vmem:[%s2 + $0x18] sm:$0xff]
    %v1324 = vld [vmem:[%s2 + $0x20] sm:$0xff]
    %v1325 = vld [vmem:[%s2 + $0x28] sm:$0xff]
    %v1326 = vld [vmem:[%s2 + $0x30] sm:$0xff]
    %v1327 = vld [vmem:[%s2 + $0x38] sm:$0xff]
    %v1328 = vld [vmem:[%s2 + $0x40] sm:$0xff]
    %v1329 = vld [vmem:[%s2 + $0x48] sm:$0xff]
    %v1330 = vld [vmem:[%s2 + $0x50] sm:$0xff]
    %v1331 = vld [vmem:[%s2 + $0x58] sm:$0xff]
    %v1332 = vld [vmem:[%s2 + $0x60] sm:$0x7f]
    %v1333 = vperm.slane %v1332, 0
    %v1334 = vadd.f32 %v1312, %v1333
    %v1335 = vadd.f32 %v1319, %v1333
    %v1336 = vadd.f32 %v15, %v1334
    %v1337 = vadd.f32 %v16, %v1335
    %v1338 = vsel %vm106, %v1336, 0.0
    %1339 = vadd.xlane.f32.xlu0 %v1338
    %v1340 = vpop.xlane.xlu0 %1339
    %v1341 = vsel %vm106, %v1337, 0.0
    %1342 = vadd.xlane.f32.xlu0 %v1341
    %v1343 = vpop.xlane.xlu0 %1342
    %v1344 = vrcp.pop 32.0
    %v1345 = vmul.f32 32.0, %v1344
    %v1346 = vsub.f32 1.0, %v1345
    %v1347 = vmul.f32 %v1344, %v1346
    %v1348 = vadd.f32 %v1344, %v1347
    %vm1349 = vweird.f32 %v1344
    %v1350 = vsel %vm1349, %v1344, %v1348
    %v1351 = vmul.f32 %v1340, %v1350
    %v1352 = vmul.f32 %v1343, %v1350
    %v1353 = vsub.f32 %v1336, %v1351
    %v1354 = vsub.f32 %v1337, %v1352
    %v1355 = vmul.f32 %v1353, %v1353
    %v1356 = vmul.f32 %v1354, %v1354
    %v1357 = vsel %vm106, %v1355, 0.0
    %1358 = vadd.xlane.f32.xlu0 %v1357
    %v1359 = vpop.xlane.xlu0 %1358
    %v1360 = vsel %vm106, %v1356, 0.0
    %1361 = vadd.xlane.f32.xlu0 %v1360
    %v1362 = vpop.xlane.xlu0 %1361
    %v1363 = vmul.f32 %v1359, %v1350
    %v1364 = vmul.f32 %v1362, %v1350
    %v1365 = vadd.f32 %v1363, 1e-05
    %v1366 = vadd.f32 %v1364, 1e-05
    %v1367 = vrsqrt.pop %v1365
    %v1368 = vmul.f32 %v1367, %v1365
    %v1369 = vmul.f32 %v1368, %v1367
    %v1370 = vmul.f32 0.5, %v1369
    %v1371 = vsub.f32 1.5, %v1370
    %v1372 = vmul.f32 %v1367, %v1371
    %vm1373 = vweird.f32 %v1365
    %vm1374 = vweird.f32 %v1367
    %vm1375 = vmor %vm1373, %vm1374
    %v1376 = vsel %vm1375, %v1367, %v1372
    %v1377 = vrsqrt.pop %v1366
    %v1378 = vmul.f32 %v1377, %v1366
    %v1379 = vmul.f32 %v1378, %v1377
    %v1380 = vmul.f32 0.5, %v1379
    %v1381 = vsub.f32 1.5, %v1380
    %v1382 = vmul.f32 %v1377, %v1381
    %vm1383 = vweird.f32 %v1366
    %vm1384 = vweird.f32 %v1377
    %vm1385 = vmor %vm1383, %vm1384
    %v1386 = vsel %vm1385, %v1377, %v1382
    %v1387 = vmul.f32 %v1353, %v1376
    %v1388 = vmul.f32 %v1354, %v1386
    %v1389 = vperm.slane %v1332, 1
    %v1390 = vmul.f32 %v1387, %v1389
    %v1391 = vmul.f32 %v1388, %v1389
    %v1392 = vperm.slane %v1332, 2
    %v1393 = vadd.f32 %v1390, %v1392
    %v1394 = vadd.f32 %v1391, %v1392
    %v1395 = vperm.slane %v1332, 6
    %v1397 = vsel %vm106, %v1393, 0
    %v1400 = vsel %vm106, %v1394, 0
    %1402 = vmatpush.msra.mxu0 0.0
    %1403 = vmatpush.msra.mxu0 0.0
    %1404 = vmatpush.msra.mxu0 0.0
    %1405 = vmatpush.msra.mxu0 0.0
    %1406 = vmatpush.msra.mxu0 0.0
    %1407 = vmatpush.msra.mxu0 0.0
    %1408 = vmatpush.msra.mxu0 0.0
    %1409 = vmatpush.msra.mxu0 0.0
    %1410 = vmatpush.msra.mxu0 0.0
    %1411 = vmatpush.msra.mxu0 0.0
    %1412 = vmatpush.msra.mxu0 0.0
    %1413 = vmatpush.msra.mxu0 0.0
    %1414 = vmatpush.msra.mxu0 %v1323
    %1415 = vmatpush.msra.mxu0 %v1322
    %1416 = vmatpush.msra.mxu0 %v1321
    %1417 = vmatpush.msra.mxu0 %v1320
    %1418 = vmatmul.f32.gmra.mxu0 %v1397
    %v1419 = vpop.f32.mrf.mxu0
    %v1420 = vadd.f32 %v1395, %v1419
    %1421 = vmatmul.f32.gmra.mxu0 %v1400
    %v1422 = vpop.f32.mrf.mxu0
    %v1423 = vadd.f32 %v1395, %v1422
    %1424 = vdwg.mxu0
    %v1425 = vmax.f32 %v1420, 0.0
    %v1426 = vmax.f32 %v1423, 0.0
    %v1427 = vperm.slane %v1332, 3
    %vm1428 = vcmask 523264
    %v1430 = vsel %vm1428, %v1425, 0
    %v1433 = vsel %vm1428, %v1426, 0
    %1435 = vmatpush.msra.mxu0 0.0
    %1436 = vmatpush.msra.mxu0 0.0
    %1437 = vmatpush.msra.mxu0 0.0
    %1438 = vmatpush.msra.mxu0 0.0
    %1439 = vmatpush.msra.mxu0 0.0
    %1440 = vmatpush.msra.mxu0 0.0
    %1441 = vmatpush.msra.mxu0 0.0
    %1442 = vmatpush.msra.mxu0 0.0
    %1443 = vmatpush.msra.mxu0 %v1331
    %1444 = vmatpush.msra.mxu0 %v1330
    %1445 = vmatpush.msra.mxu0 %v1329
    %1446 = vmatpush.msra.mxu0 %v1328
    %1447 = vmatpush.msra.mxu0 %v1327
    %1448 = vmatpush.msra.mxu0 %v1326
    %1449 = vmatpush.msra.mxu0 %v1325
    %1450 = vmatpush.msra.mxu0 %v1324
    %1451 = vmatmul.f32.gmra.mxu0 %v1430
    %v1452 = vpop.f32.mrf.mxu0
    %v1453 = vadd.f32 %v1427, %v1452
    %1454 = vmatmul.f32.gmra.mxu0 %v1433
    %v1455 = vpop.f32.mrf.mxu0
    %v1456 = vadd.f32 %v1427, %v1455
    %1457 = vdwg.mxu0
    %v1458 = vadd.f32 %v1393, %v1453
    %v1459 = vadd.f32 %v1394, %v1456
    %v1460 = vsel %vm106, %v1458, 0.0
    %1461 = vadd.xlane.f32.xlu0 %v1460
    %v1462 = vpop.xlane.xlu0 %1461
    %v1463 = vsel %vm106, %v1459, 0.0
    %1464 = vadd.xlane.f32.xlu0 %v1463
    %v1465 = vpop.xlane.xlu0 %1464
    %v1466 = vmul.f32 %v1462, %v1350
    %v1467 = vmul.f32 %v1465, %v1350
    %v1468 = vsub.f32 %v1458, %v1466
    %v1469 = vsub.f32 %v1459, %v1467
    %v1470 = vmul.f32 %v1468, %v1468
    %v1471 = vmul.f32 %v1469, %v1469
    %v1472 = vsel %vm106, %v1470, 0.0
    %1473 = vadd.xlane.f32.xlu0 %v1472
    %v1474 = vpop.xlane.xlu0 %1473
    %v1475 = vsel %vm106, %v1471, 0.0
    %1476 = vadd.xlane.f32.xlu0 %v1475
    %v1477 = vpop.xlane.xlu0 %1476
    %v1478 = vmul.f32 %v1474, %v1350
    %v1479 = vmul.f32 %v1477, %v1350
    %v1480 = vadd.f32 %v1478, 1e-05
    %v1481 = vadd.f32 %v1479, 1e-05
    %v1482 = vrsqrt.pop %v1480
    %v1483 = vmul.f32 %v1482, %v1480
    %v1484 = vmul.f32 %v1483, %v1482
    %v1485 = vmul.f32 0.5, %v1484
    %v1486 = vsub.f32 1.5, %v1485
    %v1487 = vmul.f32 %v1482, %v1486
    %vm1488 = vweird.f32 %v1480
    %vm1489 = vweird.f32 %v1482
    %vm1490 = vmor %vm1488, %vm1489
    %v1491 = vsel %vm1490, %v1482, %v1487
    %v1492 = vrsqrt.pop %v1481
    %v1493 = vmul.f32 %v1492, %v1481
    %v1494 = vmul.f32 %v1493, %v1492
    %v1495 = vmul.f32 0.5, %v1494
    %v1496 = vsub.f32 1.5, %v1495
    %v1497 = vmul.f32 %v1492, %v1496
    %vm1498 = vweird.f32 %v1481
    %vm1499 = vweird.f32 %v1492
    %vm1500 = vmor %vm1498, %vm1499
    %v1501 = vsel %vm1500, %v1492, %v1497
    %v1502 = vmul.f32 %v1468, %v1491
    %v1503 = vmul.f32 %v1469, %v1501
    %v1504 = vperm.slane %v1332, 4
    %v1505 = vmul.f32 %v1502, %v1504
    %v1506 = vmul.f32 %v1503, %v1504
    %v1507 = vperm.slane %v1332, 5
    %v1508 = vadd.f32 %v1505, %v1507
    %v1509 = vadd.f32 %v1506, %v1507
    %1510 = vst.msk [vmem:[#allocation2] sm:$0xff] %vm106, %v1508
    %1511 = vst.msk [vmem:[#allocation2 + $0x8] sm:$0xff] %vm106, %v1509
    // Predicated region
    $region14: #{tpu_custom_call.1} parent=1 // pred_check
      _
    $region15: #{tpu_custom_call.1} parent=1 // pred_check_branch
      %1513 = sbr.rel (0) target = $region17
    $region16: #{tpu_custom_call.1} parent=1 // pred_region
      %1515 = vsyncadd [#allocation3], 0
      %s1516 = sshll.u32 [#allocation2], 4
      %s1517 = int_to_ptr.vmem [resolvable:$true] %s1516
      %s1518 = sshll.u32 %s3, 4
      %s1519 = int_to_ptr.hbm [resolvable:$true] %s1518
      %1524 = dma.vmem_to_hbm [thread:$0]  %s1517, 256, %s1519, [#allocation3], 128, 128, 8
    $region17: #{tpu_custom_call.1} parent=1 // pred_fallthru
      _
    // Predicated region
    $region18: #{tpu_custom_call.1} parent=1 // pred_check
      _
    $region19: #{tpu_custom_call.1} parent=1 // pred_check_branch
      %1526 = sbr.rel (0) target = $region21
    $region20: #{tpu_custom_call.1} parent=1 // pred_region
      %1528 = dma.done [#allocation3], 256
    $region21: #{tpu_custom_call.1} parent=1 // pred_fallthru
      _
    %1529 = vsyncpa [#allocation3], 1

</llo_original>
